<compile_context>
chip_gen: v7x
topology: tpu7x:2x2x1
jax: 0.10.0
libtpu: 0.0.40
codegen_flags: <defaults>
</compile_context>

<pallas_src>
import functools

import jax
import jax.numpy as jnp
from jax.experimental import pallas as pl
from jax.experimental.pallas import tpu as pltpu


def _mha_core_kernel(resid_ref, qp_ref, kp_ref, vp_ref, wfc_ref,
                     gamma_ref, beta_ref, out_ref, attn_ref, *, eps):
    # Per-grid-step refs (batch dim squeezed by the BlockSpecs):
    #   resid_ref: (TQ, Dm)      qp_ref: (H, TQ, dk)
    #   kp_ref:    (H, Lk, dk)   vp_ref: (H, Lv, dv)
    #   wfc_ref:   (H, dv, Dm)   gamma_ref/beta_ref: (1, Dm)
    #   out_ref:   (TQ, Dm)      attn_ref: (H, TQ, Lk)
    qp = qp_ref[...]                         # already scaled by 1/temperature
    kp = kp_ref[...]

    # Scores for all heads at once (batched matmul, proven Mosaic pattern).
    scores = jnp.einsum('hqd,hkd->hqk', qp, kp,
                        preferred_element_type=jnp.float32)      # (H, TQ, Lk)
    # TODO(synk): mask==0 -> -1e9 would be applied here when a mask is given.
    scores = scores - jnp.max(scores, axis=-1, keepdims=True)
    e = jnp.exp(scores)
    denom = jnp.sum(e, axis=-1, keepdims=True)                   # (H, TQ, 1)

    # EUP approximate reciprocal + one Newton step (rel. error ~1e-7).
    r = pl.reciprocal(denom, approx=True)
    r = r * (2.0 - denom * r)
    attn = e * r                                                  # (H, TQ, Lk)

    # Single lane-dense store of all heads' probabilities.
    attn_ref[...] = attn.astype(attn_ref.dtype)

    vp = vp_ref[...]
    ctx = jnp.einsum('hqk,hkd->hqd', attn.astype(vp.dtype), vp,
                     preferred_element_type=jnp.float32)          # (H, TQ, dv)

    # Output projection + residual.  Per-head partials summed over heads
    # == concat(heads) @ W_fc.
    # TODO(synk): collapse to one (TQ, H*dv) x (H*dv, Dm) matmul once the
    #             head-minor relayout of ctx is cheap (review item).
    wfc = wfc_ref[...]
    fc_out = jnp.einsum('hqd,hdm->hqm', ctx.astype(wfc.dtype), wfc,
                        preferred_element_type=jnp.float32).sum(axis=0)  # (TQ, Dm)

    res = fc_out + resid_ref[...].astype(jnp.float32)

    # LayerNorm over last dim (eps=1e-6, biased variance like PyTorch).
    mean = jnp.mean(res, axis=-1, keepdims=True)
    centered = res - mean
    var = jnp.mean(centered * centered, axis=-1, keepdims=True)
    inv_std = jax.lax.rsqrt(var + jnp.float32(eps))
    normed = (centered * inv_std * gamma_ref[...].astype(jnp.float32)
              + beta_ref[...].astype(jnp.float32))

    out_ref[...] = normed.astype(out_ref.dtype)


def _default_vmem_limit_bytes() -> int:
    """Chip-aware VMEM limit: ~56 MiB on v7x (64 MiB/TC), ~112 MiB on v5e/v6e."""
    try:
        cap = int(pltpu.get_tpu_info().vmem_capacity_bytes)
    except Exception:  # query unavailable -> conservative default
        cap = 64 * 1024 * 1024
    return min((cap * 7) // 8, 112 * 1024 * 1024)


def prepare_params(params, *, n_head, d_k, d_v):
    """One-time re-layout of PyTorch-convention parameters.

    nn.Linear weights are (out, in); the projections want fused lane-dense
    (Dm, H*d) matrices (1/temperature folded into W_q), and the in-kernel
    output projection wants per-head (H, dv, Dm).  Done once at setup, not per
    forward call.
    """
    d_model = params["w_qs"].shape[1]
    inv_temp = 1.0 / (float(d_k) ** 0.5)
    return {
        "wq": jnp.asarray(params["w_qs"]).T * inv_temp,            # (Dm, H*dk)
        "wk": jnp.asarray(params["w_ks"]).T,                       # (Dm, H*dk)
        "wv": jnp.asarray(params["w_vs"]).T,                       # (Dm, H*dv)
        "wfc3": jnp.asarray(params["fc"]).T.reshape(n_head, d_v, d_model),
        "ln_gamma": jnp.asarray(params["ln_gamma"]).reshape(1, d_model),
        "ln_beta": jnp.asarray(params["ln_beta"]).reshape(1, d_model),
    }


def multi_head_attention(q, k, v, prepared, *, n_head, d_k, d_v, q_tile=256):
    """q: (B, Lq, Dm), k: (B, Lk, Dm), v: (B, Lv, Dm). Returns (out, attn)."""
    B, Lq, Dm = q.shape
    _, Lk, _ = k.shape
    _, Lv, _ = v.shape
    assert Lk == Lv
    # TODO(synk): ragged Lq (not a multiple of q_tile) would need padding+mask.
    tq = min(Lq, q_tile)
    assert Lq % tq == 0, "Lq must be a multiple of the q tile size"
    n_q_tiles = Lq // tq

    # Lane-dense fused projections, run ONCE per forward as plain XLA GEMMs
    # (hoists the K/V projection out of the q-tile loop entirely), then split
    # into per-head layout for the attention core.  Temperature already folded
    # into W_q.
    qp = (q @ prepared["wq"]).reshape(B, Lq, n_head, d_k).transpose(0, 2, 1, 3)
    kp = (k @ prepared["wk"]).reshape(B, Lk, n_head, d_k).transpose(0, 2, 1, 3)
    vp = (v @ prepared["wv"]).reshape(B, Lv, n_head, d_v).transpose(0, 2, 1, 3)

    wfc3 = prepared["wfc3"]
    gamma, beta = prepared["ln_gamma"], prepared["ln_beta"]

    kernel = functools.partial(_mha_core_kernel, eps=1e-6)

    # Grid-invariant operands: full block, constant index map, so Pallas never
    # re-fetches them across grid steps.
    def invariant(a):
        return pl.BlockSpec(a.shape, lambda b, qi: (0,) * a.ndim)

    out, attn = pl.pallas_call(
        kernel,
        out_shape=(
            jax.ShapeDtypeStruct((B, Lq, Dm), q.dtype),
            jax.ShapeDtypeStruct((B, n_head, Lq, Lk), q.dtype),
        ),
        grid_spec=pltpu.PrefetchScalarGridSpec(
            num_scalar_prefetch=0,
            grid=(B, n_q_tiles),
            in_specs=[
                pl.BlockSpec((None, tq, Dm), lambda b, qi: (b, qi, 0)),        # residual q
                pl.BlockSpec((None, n_head, tq, d_k), lambda b, qi: (b, 0, qi, 0)),
                pl.BlockSpec((None, n_head, Lk, d_k), lambda b, qi: (b, 0, 0, 0)),
                pl.BlockSpec((None, n_head, Lv, d_v), lambda b, qi: (b, 0, 0, 0)),
                invariant(wfc3),
                invariant(gamma),
                invariant(beta),
            ],
            out_specs=[
                pl.BlockSpec((None, tq, Dm), lambda b, qi: (b, qi, 0)),
                pl.BlockSpec((None, n_head, tq, Lk), lambda b, qi: (b, 0, qi, 0)),
            ],
        ),
        compiler_params=pltpu.CompilerParams(
            dimension_semantics=("parallel", "parallel"),
            vmem_limit_bytes=_default_vmem_limit_bytes()),
    )(q, qp, kp, vp, wfc3, gamma, beta)
    return out, attn


def _reference(q, k, v, params, *, n_head, d_k, d_v):
    """Pure-JAX reference matching the PyTorch module."""
    B, Lq, Dm = q.shape
    Lk = k.shape[1]
    qp = (q @ params["w_qs"].T).reshape(B, Lq, n_head, d_k).transpose(0, 2, 1, 3)
    kp = (k @ params["w_ks"].T).reshape(B, Lk, n_head, d_k).transpose(0, 2, 1, 3)
    vp = (v @ params["w_vs"].T).reshape(B, Lk, n_head, d_v).transpose(0, 2, 1, 3)
    attn = jax.nn.softmax(
        jnp.einsum("bhqd,bhkd->bhqk", qp / (d_k ** 0.5), kp), axis=-1)
    out = jnp.einsum("bhqk,bhkd->bhqd", attn, vp)
    out = out.transpose(0, 2, 1, 3).reshape(B, Lq, n_head * d_v)
    out = out @ params["fc"].T + q
    mean = out.mean(-1, keepdims=True)
    var = ((out - mean) ** 2).mean(-1, keepdims=True)
    out = (out - mean) / jnp.sqrt(var + 1e-6) * params["ln_gamma"] + params["ln_beta"]
    return out, attn


if __name__ == "__main__":
    # Small shapes consistent with the module's forward.
    B, L, d_model = 2, 8, 32
    n_head, d_k, d_v = 4, 8, 8

    key = jax.random.PRNGKey(0)
    kq, kk, kv, k1, k2, k3, k4 = jax.random.split(key, 7)

    q = jax.random.normal(kq, (B, L, d_model), dtype=jnp.float32)
    k = jax.random.normal(kk, (B, L, d_model), dtype=jnp.float32)
    v = jax.random.normal(kv, (B, L, d_model), dtype=jnp.float32)

    # Deterministic parameter init (nn.Linear weight shape is (out, in)).
    scale = 1.0 / (d_model ** 0.5)
    params = {
        "w_qs": scale * jax.random.normal(k1, (n_head * d_k, d_model), jnp.float32),
        "w_ks": scale * jax.random.normal(k2, (n_head * d_k, d_model), jnp.float32),
        "w_vs": scale * jax.random.normal(k3, (n_head * d_v, d_model), jnp.float32),
        "fc":   scale * jax.random.normal(k4, (d_model, n_head * d_v), jnp.float32),
        "ln_gamma": jnp.ones((d_model,), jnp.float32),
        "ln_beta": jnp.zeros((d_model,), jnp.float32),
    }

    # One-time weight re-layout (done at parameter setup, not per forward).
    prepared = prepare_params(params, n_head=n_head, d_k=d_k, d_v=d_v)

    mha = jax.jit(functools.partial(
        multi_head_attention, n_head=n_head, d_k=d_k, d_v=d_v))
    out, attn = mha(q, k, v, prepared)
    jax.block_until_ready(out)
    jax.block_until_ready(attn)

    ref_out, ref_attn = _reference(q, k, v, params,
                                   n_head=n_head, d_k=d_k, d_v=d_v)
    assert jnp.allclose(out, ref_out, atol=1e-4, rtol=1e-4)
    assert jnp.allclose(attn, ref_attn, atol=1e-5, rtol=1e-5)

    print("KERNEL_OK")
</pallas_src>

<mosaic_0001>
module attributes {stable_mosaic.version = 11 : i64} {
  func.func @_mha_core_kernel(%arg0: i32, %arg1: i32, %arg2: memref<1x8x32xf32, #tpu.memory_space<vmem>>, %arg3: memref<1x4x8x8xf32, #tpu.memory_space<vmem>>, %arg4: memref<1x4x8x8xf32, #tpu.memory_space<vmem>>, %arg5: memref<1x4x8x8xf32, #tpu.memory_space<vmem>>, %arg6: memref<4x8x32xf32, #tpu.memory_space<vmem>>, %arg7: memref<1x32xf32, #tpu.memory_space<vmem>>, %arg8: memref<1x32xf32, #tpu.memory_space<vmem>>, %arg9: memref<1x8x32xf32, #tpu.memory_space<vmem>>, %arg10: memref<1x4x8x8xf32, #tpu.memory_space<vmem>>) attributes {dimension_semantics = [#tpu.dimension_semantics<parallel>, #tpu.dimension_semantics<parallel>], iteration_bounds = array<i64: 2, 1>, scalar_prefetch = 0 : i64, scratch_operands = 0 : i64, tpu.core_type = #tpu.core_type<tc>, window_params = [{transform_indices = @transform_0, window_bounds = array<i64: 1, 8, 32>}, {transform_indices = @transform_1, window_bounds = array<i64: 1, 4, 8, 8>}, {transform_indices = @transform_2, window_bounds = array<i64: 1, 4, 8, 8>}, {transform_indices = @transform_3, window_bounds = array<i64: 1, 4, 8, 8>}, {pipeline_mode = #tpu.pipeline_mode<synchronous>, transform_indices = @transform_4, window_bounds = array<i64: 4, 8, 32>}, {pipeline_mode = #tpu.pipeline_mode<synchronous>, transform_indices = @transform_5, window_bounds = array<i64: 1, 32>}, {pipeline_mode = #tpu.pipeline_mode<synchronous>, transform_indices = @transform_6, window_bounds = array<i64: 1, 32>}, {transform_indices = @transform_7, window_bounds = array<i64: 1, 8, 32>}, {transform_indices = @transform_8, window_bounds = array<i64: 1, 4, 8, 8>}]} {
    %c0 = arith.constant 0 : index
    %c0_0 = arith.constant 0 : index
    %c0_1 = arith.constant 0 : index
    %c0_2 = arith.constant 0 : index
    %0 = vector.load %arg3[%c0, %c0_0, %c0_1, %c0_2] : memref<1x4x8x8xf32, #tpu.memory_space<vmem>>, vector<1x4x8x8xf32>
    %1 = vector.shape_cast %0 : vector<1x4x8x8xf32> to vector<4x8x8xf32>
    %c0_3 = arith.constant 0 : index
    %c0_4 = arith.constant 0 : index
    %c0_5 = arith.constant 0 : index
    %c0_6 = arith.constant 0 : index
    %2 = vector.load %arg4[%c0_3, %c0_4, %c0_5, %c0_6] : memref<1x4x8x8xf32, #tpu.memory_space<vmem>>, vector<1x4x8x8xf32>
    %3 = vector.shape_cast %2 : vector<1x4x8x8xf32> to vector<4x8x8xf32>
    "tpu.trace_start"() <{level = 10 : i32, message = "hqd,hkd->hqk"}> : () -> ()
    %cst = arith.constant dense<0.000000e+00> : vector<4x8x8xf32>
    %4 = tpu.matmul %1, %3, %cst {dimension_numbers = #tpu.dot_dimension_numbers<[2], [2], [1], [1], [0, 0, 0, 1, 1, 1], [0], [0]>} : vector<4x8x8xf32>, vector<4x8x8xf32>, vector<4x8x8xf32> -> vector<4x8x8xf32>
    "tpu.trace_stop"() : () -> ()
    %cst_7 = arith.constant dense<0xFF800000> : vector<4x8xf32>
    %5 = vector.multi_reduction <maximumf>, %4, %cst_7 [2] : vector<4x8x8xf32> to vector<4x8xf32>
    %6 = vector.shape_cast %5 : vector<4x8xf32> to vector<4x8x1xf32>
    %7 = vector.broadcast %6 : vector<4x8x1xf32> to vector<4x8x8xf32>
    %8 = arith.subf %4, %7 : vector<4x8x8xf32>
    %9 = math.exp %8 : vector<4x8x8xf32>
    %cst_8 = arith.constant dense<0.000000e+00> : vector<4x8xf32>
    %10 = vector.multi_reduction <add>, %9, %cst_8 [2] : vector<4x8x8xf32> to vector<4x8xf32>
    %11 = vector.shape_cast %10 : vector<4x8xf32> to vector<4x8x1xf32>
    %12 = tpu.reciprocal %11 {approx = true} : vector<4x8x1xf32> -> vector<4x8x1xf32>
    %13 = arith.mulf %11, %12 : vector<4x8x1xf32>
    %cst_9 = arith.constant 2.000000e+00 : f32
    %14 = vector.broadcast %cst_9 : f32 to vector<4x8x1xf32>
    %15 = arith.subf %14, %13 : vector<4x8x1xf32>
    %16 = arith.mulf %12, %15 : vector<4x8x1xf32>
    %17 = vector.broadcast %16 : vector<4x8x1xf32> to vector<4x8x8xf32>
    %18 = arith.mulf %9, %17 : vector<4x8x8xf32>
    %c0_10 = arith.constant 0 : index
    %c0_11 = arith.constant 0 : index
    %c0_12 = arith.constant 0 : index
    %c0_13 = arith.constant 0 : index
    %19 = vector.load %arg10[%c0_10, %c0_11, %c0_12, %c0_13] : memref<1x4x8x8xf32, #tpu.memory_space<vmem>>, vector<1x4x8x8xf32>
    %20 = vector.shape_cast %19 : vector<1x4x8x8xf32> to vector<4x8x8xf32>
    %21 = vector.shape_cast %18 : vector<4x8x8xf32> to vector<1x4x8x8xf32>
    tpu.vector_store %arg10[%c0_10, %c0_11, %c0_12, %c0_13], %21 {strides = array<i32>} : memref<1x4x8x8xf32, #tpu.memory_space<vmem>>, vector<1x4x8x8xf32>,
    %c0_14 = arith.constant 0 : index
    %c0_15 = arith.constant 0 : index
    %c0_16 = arith.constant 0 : index
    %c0_17 = arith.constant 0 : index
    %22 = vector.load %arg5[%c0_14, %c0_15, %c0_16, %c0_17] : memref<1x4x8x8xf32, #tpu.memory_space<vmem>>, vector<1x4x8x8xf32>
    %23 = vector.shape_cast %22 : vector<1x4x8x8xf32> to vector<4x8x8xf32>
    "tpu.trace_start"() <{level = 10 : i32, message = "hqk,hkd->hqd"}> : () -> ()
    %cst_18 = arith.constant dense<0.000000e+00> : vector<4x8x8xf32>
    %24 = tpu.matmul %18, %23, %cst_18 {dimension_numbers = #tpu.dot_dimension_numbers<[2], [1], [1], [2], [0, 0, 0, 1, 1, 2], [0], [0]>} : vector<4x8x8xf32>, vector<4x8x8xf32>, vector<4x8x8xf32> -> vector<4x8x8xf32>
    "tpu.trace_stop"() : () -> ()
    %c0_19 = arith.constant 0 : index
    %c0_20 = arith.constant 0 : index
    %c0_21 = arith.constant 0 : index
    %25 = vector.load %arg6[%c0_19, %c0_20, %c0_21] : memref<4x8x32xf32, #tpu.memory_space<vmem>>, vector<4x8x32xf32>
    "tpu.trace_start"() <{level = 10 : i32, message = "hqd,hdm->hqm"}> : () -> ()
    %cst_22 = arith.constant dense<0.000000e+00> : vector<4x8x32xf32>
    %26 = tpu.matmul %24, %25, %cst_22 {dimension_numbers = #tpu.dot_dimension_numbers<[2], [1], [1], [2], [0, 0, 0, 1, 1, 2], [0], [0]>} : vector<4x8x8xf32>, vector<4x8x32xf32>, vector<4x8x32xf32> -> vector<4x8x32xf32>
    "tpu.trace_stop"() : () -> ()
    %cst_23 = arith.constant dense<0.000000e+00> : vector<8x32xf32>
    %27 = vector.multi_reduction <add>, %26, %cst_23 [0] : vector<4x8x32xf32> to vector<8x32xf32>
    %c0_24 = arith.constant 0 : index
    %c0_25 = arith.constant 0 : index
    %c0_26 = arith.constant 0 : index
    %28 = vector.load %arg2[%c0_24, %c0_25, %c0_26] : memref<1x8x32xf32, #tpu.memory_space<vmem>>, vector<1x8x32xf32>
    %29 = vector.shape_cast %28 : vector<1x8x32xf32> to vector<8x32xf32>
    %30 = arith.addf %27, %29 : vector<8x32xf32>
    %cst_27 = arith.constant dense<0.000000e+00> : vector<8xf32>
    %31 = vector.multi_reduction <add>, %30, %cst_27 [1] : vector<8x32xf32> to vector<8xf32>
    %32 = vector.shape_cast %31 : vector<8xf32> to vector<8x1xf32>
    %cst_28 = arith.constant 3.200000e+01 : f32
    %33 = vector.broadcast %cst_28 : f32 to vector<8x1xf32>
    %34 = arith.divf %32, %33 : vector<8x1xf32>
    %35 = vector.broadcast %34 : vector<8x1xf32> to vector<8x32xf32>
    %36 = arith.subf %30, %35 : vector<8x32xf32>
    %37 = arith.mulf %36, %36 : vector<8x32xf32>
    %cst_29 = arith.constant dense<0.000000e+00> : vector<8xf32>
    %38 = vector.multi_reduction <add>, %37, %cst_29 [1] : vector<8x32xf32> to vector<8xf32>
    %39 = vector.shape_cast %38 : vector<8xf32> to vector<8x1xf32>
    %cst_30 = arith.constant 3.200000e+01 : f32
    %40 = vector.broadcast %cst_30 : f32 to vector<8x1xf32>
    %41 = arith.divf %39, %40 : vector<8x1xf32>
    %cst_31 = arith.constant 9.99999997E-7 : f32
    %42 = vector.broadcast %cst_31 : f32 to vector<8x1xf32>
    %43 = arith.addf %41, %42 : vector<8x1xf32>
    %44 = math.rsqrt %43 : vector<8x1xf32>
    %45 = vector.broadcast %44 : vector<8x1xf32> to vector<8x32xf32>
    %46 = arith.mulf %36, %45 : vector<8x32xf32>
    %c0_32 = arith.constant 0 : index
    %c0_33 = arith.constant 0 : index
    %47 = vector.load %arg7[%c0_32, %c0_33] : memref<1x32xf32, #tpu.memory_space<vmem>>, vector<1x32xf32>
    %48 = vector.broadcast %47 : vector<1x32xf32> to vector<8x32xf32>
    %49 = arith.mulf %46, %48 : vector<8x32xf32>
    %c0_34 = arith.constant 0 : index
    %c0_35 = arith.constant 0 : index
    %50 = vector.load %arg8[%c0_34, %c0_35] : memref<1x32xf32, #tpu.memory_space<vmem>>, vector<1x32xf32>
    %51 = vector.broadcast %50 : vector<1x32xf32> to vector<8x32xf32>
    %52 = arith.addf %49, %51 : vector<8x32xf32>
    %c0_36 = arith.constant 0 : index
    %c0_37 = arith.constant 0 : index
    %c0_38 = arith.constant 0 : index
    %53 = vector.load %arg9[%c0_36, %c0_37, %c0_38] : memref<1x8x32xf32, #tpu.memory_space<vmem>>, vector<1x8x32xf32>
    %54 = vector.shape_cast %53 : vector<1x8x32xf32> to vector<8x32xf32>
    %55 = vector.shape_cast %52 : vector<8x32xf32> to vector<1x8x32xf32>
    tpu.vector_store %arg9[%c0_36, %c0_37, %c0_38], %55 {strides = array<i32>} : memref<1x8x32xf32, #tpu.memory_space<vmem>>, vector<1x8x32xf32>,
    return
  }
  func.func @transform_0(%arg0: i32, %arg1: i32) -> (i32, i32, i32) {
    %c0_i32 = arith.constant 0 : i32
    %c0_i32_0 = arith.constant 0 : i32
    return %arg0, %arg1, %c0_i32 : i32, i32, i32
  }
  func.func @transform_1(%arg0: i32, %arg1: i32) -> (i32, i32, i32, i32) {
    %c0_i32 = arith.constant 0 : i32
    %c0_i32_0 = arith.constant 0 : i32
    %c0_i32_1 = arith.constant 0 : i32
    return %arg0, %c0_i32, %arg1, %c0_i32_0 : i32, i32, i32, i32
  }
  func.func @transform_2(%arg0: i32, %arg1: i32) -> (i32, i32, i32, i32) {
    %c0_i32 = arith.constant 0 : i32
    %c0_i32_0 = arith.constant 0 : i32
    %c0_i32_1 = arith.constant 0 : i32
    %c0_i32_2 = arith.constant 0 : i32
    return %arg0, %c0_i32, %c0_i32_0, %c0_i32_1 : i32, i32, i32, i32
  }
  func.func @transform_3(%arg0: i32, %arg1: i32) -> (i32, i32, i32, i32) {
    %c0_i32 = arith.constant 0 : i32
    %c0_i32_0 = arith.constant 0 : i32
    %c0_i32_1 = arith.constant 0 : i32
    %c0_i32_2 = arith.constant 0 : i32
    return %arg0, %c0_i32, %c0_i32_0, %c0_i32_1 : i32, i32, i32, i32
  }
  func.func @transform_4(%arg0: i32, %arg1: i32) -> (i32, i32, i32) {
    %c0_i32 = arith.constant 0 : i32
    %c0_i32_0 = arith.constant 0 : i32
    %c0_i32_1 = arith.constant 0 : i32
    %c0_i32_2 = arith.constant 0 : i32
    return %c0_i32, %c0_i32_0, %c0_i32_1 : i32, i32, i32
  }
  func.func @transform_5(%arg0: i32, %arg1: i32) -> (i32, i32) {
    %c0_i32 = arith.constant 0 : i32
    %c0_i32_0 = arith.constant 0 : i32
    %c0_i32_1 = arith.constant 0 : i32
    return %c0_i32, %c0_i32_0 : i32, i32
  }
  func.func @transform_6(%arg0: i32, %arg1: i32) -> (i32, i32) {
    %c0_i32 = arith.constant 0 : i32
    %c0_i32_0 = arith.constant 0 : i32
    %c0_i32_1 = arith.constant 0 : i32
    return %c0_i32, %c0_i32_0 : i32, i32
  }
  func.func @transform_7(%arg0: i32, %arg1: i32) -> (i32, i32, i32) {
    %c0_i32 = arith.constant 0 : i32
    %c0_i32_0 = arith.constant 0 : i32
    return %arg0, %arg1, %c0_i32 : i32, i32, i32
  }
  func.func @transform_8(%arg0: i32, %arg1: i32) -> (i32, i32, i32, i32) {
    %c0_i32 = arith.constant 0 : i32
    %c0_i32_0 = arith.constant 0 : i32
    %c0_i32_1 = arith.constant 0 : i32
    return %arg0, %c0_i32, %arg1, %c0_i32_0 : i32, i32, i32, i32
  }
}

</mosaic_0001>

<llo_original>
// kernel: multi_head_attention.1
$region0: #{multi_head_attention.1}
  #allocation0 [shape = 'u32[]', space=smem, size = 0x4, offset = 0x4, fixed_abs, tag = 'smem constant byte address 0x4 - core index']
  #allocation1 [shape = 'u32[144,128]{1,0:T(1,128)}', space=vmem, size = 0x12000, scoped, tag = 'internal scratch']
  %s0 = inlined_call_operand.vmem [shape: f32[2,8,32], index: 0, kind: input, shape index: {}]
  %s1 = inlined_call_operand.vmem [shape: f32[2,4,8,8], index: 1, kind: input, shape index: {}]
  %s2 = inlined_call_operand.vmem [shape: f32[2,4,8,8], index: 2, kind: input, shape index: {}]
  %s3 = inlined_call_operand.vmem [shape: f32[2,4,8,8], index: 3, kind: input, shape index: {}]
  %s4 = inlined_call_operand.vmem [shape: f32[4,8,32], index: 4, kind: input, shape index: {}]
  %s5 = inlined_call_operand.vmem [shape: f32[1,32], index: 5, kind: input, shape index: {}]
  %s6 = inlined_call_operand.vmem [shape: f32[1,32], index: 6, kind: input, shape index: {}]
  %s7 = inlined_call_operand.hbm [shape: f32[2,8,32], index: 7, kind: output, shape index: {0}]
  %s8 = inlined_call_operand.hbm [shape: f32[2,4,8,8], index: 8, kind: output, shape index: {1}]
  %9 = xla_tuple %s7, %s8
  %s10 = sld [smem:[#allocation0]]
  $region69: #{multi_head_attention.1} parent=0
    _
  %s12 = ssub.s32 1, %s10
  %s13 = scalar_select 0, %s12, %s10
  $region1: #{multi_head_attention.1} parent=0
    #allocation2 [shape = 'u8[8192]{0}', space=vmem, size = 0x2000, scoped, tag = 'output window, operand 0']
    #allocation3 [shape = 's32[2]{0}', space=sflag, size = 0x8, scoped, tag = 'scoped memory for multi_head_attention.1']
    #allocation4 [shape = 'u8[32768]{0}', space=vmem, size = 0x8000, scoped, tag = 'output window, operand 1']
    #allocation5 [shape = 's32[2]{0}', space=sflag, size = 0x8, scoped, tag = 'scoped memory for multi_head_attention.1']
    %14 = vsyncpa [#allocation3], 0
    %s15 = scalar_lea.sflag [#allocation3], 1
    %16 = vsyncpa %s15, 0
    %17 = vsyncpa [#allocation5], 0
    %s18 = scalar_lea.sflag [#allocation5], 1
    %19 = vsyncpa %s18, 0
    loop: start=0, step=1, limit=4
    $region2: #{multi_head_attention.1} parent=1 // loop_pre_header
      _
    $region3: #{multi_head_attention.1} parent=1 // loop_header
      %s21 = sphi 0, %s25
      %p22 = scmp.ge.s32.totalorder %s21, 4
      %s28 = sphi 0, %s40
      %s29 = sphi 0, %s36
      %s30 = sphi 0, %s28
      %s31 = sphi 0, %s29
      %s32 = sphi 0, %s30
      %s33 = sphi 0, %s31
      %s45 = sphi 0, %s47
      %s48 = sphi 0, %s45
      %s49 = sphi 0, %s48
      %s65 = sphi 0, %s49
      %s73 = sphi 0, %s75
      %s76 = sphi 0, %s73
      %s77 = sphi 0, %s76
      %s93 = sphi 0, %s77
      %s99 = sphi 0, %s101
      %s102 = sphi 0, %s99
      %s103 = sphi 0, %s102
      %s119 = sphi 0, %s103
      %s125 = sphi 0, %s127
      %s128 = sphi 0, %s125
      %s129 = sphi 0, %s128
      %s145 = sphi 0, %s129
      %s149 = sphi 0, %s149
      %s151 = sphi 0, %s149
      %s152 = sphi 0, %s151
      %s166 = sphi 0, %s152
      %s170 = sphi 0, %s170
      %s172 = sphi 0, %s170
      %s173 = sphi 0, %s172
      %s187 = sphi 0, %s173
      %s191 = sphi 0, %s191
      %s193 = sphi 0, %s191
      %s194 = sphi 0, %s193
      %s208 = sphi 0, %s194
      %s216 = sphi 0, %s218
      %s219 = sphi 0, %s216
      %s220 = sphi 0, %s219
      %s236 = sphi 0, %s220
      %s244 = sphi 0, %s246
      %s247 = sphi 0, %s244
      %s248 = sphi 0, %s247
      %s264 = sphi 0, %s248
    $region4: #{multi_head_attention.1} parent=1 // loop_header_branch
      %24 = sbr.rel (%p22) target = $region8
    $region5: #{multi_head_attention.1} parent=1 // loop_body
      %s26 = ssub.s32 %s21, 1
      %s27 = ssub.s32 %s21, 2
      %s34 = sadd.s32 1, %s29
      %p35 = scmp.ge.s32.totalorder %s34, 1
      %s36 = scalar_select %p35, 0, %s34
      %s37 = sadd.s32 1, %s28
      %s38 = scalar_select %p35, %s37, %s28
      %p39 = scmp.ge.s32.totalorder %s38, 2
      %s40 = scalar_select %p39, 0, %s38
      %s41 = ssub.s32 %s28, %s40
      %s42 = ssub.s32 %s29, %s36
      %s43 = sor.u32 %s41, %s42
      %p44 = scmp.eq.s32.totalorder %s43, 0
      %s46 = sadd.s32 %s45, 1
      %s47 = scalar_select %p44, %s45, %s46
      %p50 = pneg %p44
      %p51 = scmp.eq.s32.totalorder %s21, 1
      %p52 = por %p50, %p51
      %p53 = scmp.ne.s32.totalorder %s45, %s48
      %p54 = scmp.eq.s32.totalorder %s21, 0
      %p55 = por %p53, %p54
      %p56 = scmp.ne.s32.totalorder %s45, %s48
      %p57 = scmp.eq.s32.totalorder %s26, 1
      %p58 = por %p56, %p57
      %p59 = scmp.ne.s32.totalorder %s48, %s49
      %p60 = scmp.eq.s32.totalorder %s26, 0
      %p61 = por %p59, %p60
      %p62 = scmp.ne.s32.totalorder %s48, %s49
      %p63 = scmp.eq.s32.totalorder %s27, 1
      %p64 = por %p62, %p63
      %p66 = scmp.ne.s32.totalorder %s49, %s65
      %p67 = scmp.eq.s32.totalorder %s27, 0
      %p68 = por %p66, %p67
      %s69 = ssub.s32 %s28, %s40
      %s70 = ssub.s32 %s29, %s36
      %s71 = sor.u32 %s69, %s70
      %p72 = scmp.eq.s32.totalorder %s71, 0
      %s74 = sadd.s32 %s73, 1
      %s75 = scalar_select %p72, %s73, %s74
      %p78 = pneg %p72
      %p79 = scmp.eq.s32.totalorder %s21, 1
      %p80 = por %p78, %p79
      %p81 = scmp.ne.s32.totalorder %s73, %s76
      %p82 = scmp.eq.s32.totalorder %s21, 0
      %p83 = por %p81, %p82
      %p84 = scmp.ne.s32.totalorder %s73, %s76
      %p85 = scmp.eq.s32.totalorder %s26, 1
      %p86 = por %p84, %p85
      %p87 = scmp.ne.s32.totalorder %s76, %s77
      %p88 = scmp.eq.s32.totalorder %s26, 0
      %p89 = por %p87, %p88
      %p90 = scmp.ne.s32.totalorder %s76, %s77
      %p91 = scmp.eq.s32.totalorder %s27, 1
      %p92 = por %p90, %p91
      %p94 = scmp.ne.s32.totalorder %s77, %s93
      %p95 = scmp.eq.s32.totalorder %s27, 0
      %p96 = por %p94, %p95
      %s97 = ssub.s32 %s28, %s40
      %p98 = scmp.eq.s32.totalorder %s97, 0
      %s100 = sadd.s32 %s99, 1
      %s101 = scalar_select %p98, %s99, %s100
      %p104 = pneg %p98
      %p105 = scmp.eq.s32.totalorder %s21, 1
      %p106 = por %p104, %p105
      %p107 = scmp.ne.s32.totalorder %s99, %s102
      %p108 = scmp.eq.s32.totalorder %s21, 0
      %p109 = por %p107, %p108
      %p110 = scmp.ne.s32.totalorder %s99, %s102
      %p111 = scmp.eq.s32.totalorder %s26, 1
      %p112 = por %p110, %p111
      %p113 = scmp.ne.s32.totalorder %s102, %s103
      %p114 = scmp.eq.s32.totalorder %s26, 0
      %p115 = por %p113, %p114
      %p116 = scmp.ne.s32.totalorder %s102, %s103
      %p117 = scmp.eq.s32.totalorder %s27, 1
      %p118 = por %p116, %p117
      %p120 = scmp.ne.s32.totalorder %s103, %s119
      %p121 = scmp.eq.s32.totalorder %s27, 0
      %p122 = por %p120, %p121
      %s123 = ssub.s32 %s28, %s40
      %p124 = scmp.eq.s32.totalorder %s123, 0
      %s126 = sadd.s32 %s125, 1
      %s127 = scalar_select %p124, %s125, %s126
      %p130 = pneg %p124
      %p131 = scmp.eq.s32.totalorder %s21, 1
      %p132 = por %p130, %p131
      %p133 = scmp.ne.s32.totalorder %s125, %s128
      %p134 = scmp.eq.s32.totalorder %s21, 0
      %p135 = por %p133, %p134
      %p136 = scmp.ne.s32.totalorder %s125, %s128
      %p137 = scmp.eq.s32.totalorder %s26, 1
      %p138 = por %p136, %p137
      %p139 = scmp.ne.s32.totalorder %s128, %s129
      %p140 = scmp.eq.s32.totalorder %s26, 0
      %p141 = por %p139, %p140
      %p142 = scmp.ne.s32.totalorder %s128, %s129
      %p143 = scmp.eq.s32.totalorder %s27, 1
      %p144 = por %p142, %p143
      %p146 = scmp.ne.s32.totalorder %s129, %s145
      %p147 = scmp.eq.s32.totalorder %s27, 0
      %p148 = por %p146, %p147
      %s150 = sadd.s32 %s149, 1
      %p153 = scmp.eq.s32.totalorder %s21, 1
      %p154 = scmp.ne.s32.totalorder %s149, %s151
      %p155 = scmp.eq.s32.totalorder %s21, 0
      %p156 = por %p154, %p155
      %p157 = scmp.ne.s32.totalorder %s149, %s151
      %p158 = scmp.eq.s32.totalorder %s26, 1
      %p159 = por %p157, %p158
      %p160 = scmp.ne.s32.totalorder %s151, %s152
      %p161 = scmp.eq.s32.totalorder %s26, 0
      %p162 = por %p160, %p161
      %p163 = scmp.ne.s32.totalorder %s151, %s152
      %p164 = scmp.eq.s32.totalorder %s27, 1
      %p165 = por %p163, %p164
      %p167 = scmp.ne.s32.totalorder %s152, %s166
      %p168 = scmp.eq.s32.totalorder %s27, 0
      %p169 = por %p167, %p168
      %s171 = sadd.s32 %s170, 1
      %p174 = scmp.eq.s32.totalorder %s21, 1
      %p175 = scmp.ne.s32.totalorder %s170, %s172
      %p176 = scmp.eq.s32.totalorder %s21, 0
      %p177 = por %p175, %p176
      %p178 = scmp.ne.s32.totalorder %s170, %s172
      %p179 = scmp.eq.s32.totalorder %s26, 1
      %p180 = por %p178, %p179
      %p181 = scmp.ne.s32.totalorder %s172, %s173
      %p182 = scmp.eq.s32.totalorder %s26, 0
      %p183 = por %p181, %p182
      %p184 = scmp.ne.s32.totalorder %s172, %s173
      %p185 = scmp.eq.s32.totalorder %s27, 1
      %p186 = por %p184, %p185
      %p188 = scmp.ne.s32.totalorder %s173, %s187
      %p189 = scmp.eq.s32.totalorder %s27, 0
      %p190 = por %p188, %p189
      %s192 = sadd.s32 %s191, 1
      %p195 = scmp.eq.s32.totalorder %s21, 1
      %p196 = scmp.ne.s32.totalorder %s191, %s193
      %p197 = scmp.eq.s32.totalorder %s21, 0
      %p198 = por %p196, %p197
      %p199 = scmp.ne.s32.totalorder %s191, %s193
      %p200 = scmp.eq.s32.totalorder %s26, 1
      %p201 = por %p199, %p200
      %p202 = scmp.ne.s32.totalorder %s193, %s194
      %p203 = scmp.eq.s32.totalorder %s26, 0
      %p204 = por %p202, %p203
      %p205 = scmp.ne.s32.totalorder %s193, %s194
      %p206 = scmp.eq.s32.totalorder %s27, 1
      %p207 = por %p205, %p206
      %p209 = scmp.ne.s32.totalorder %s194, %s208
      %p210 = scmp.eq.s32.totalorder %s27, 0
      %p211 = por %p209, %p210
      %s212 = ssub.s32 %s28, %s40
      %s213 = ssub.s32 %s29, %s36
      %s214 = sor.u32 %s212, %s213
      %p215 = scmp.eq.s32.totalorder %s214, 0
      %s217 = sadd.s32 %s216, 1
      %s218 = scalar_select %p215, %s216, %s217
      %p221 = pneg %p215
      %p222 = scmp.eq.s32.totalorder %s21, 1
      %p223 = por %p221, %p222
      %p224 = scmp.ne.s32.totalorder %s216, %s219
      %p225 = scmp.eq.s32.totalorder %s21, 0
      %p226 = por %p224, %p225
      %p227 = scmp.ne.s32.totalorder %s216, %s219
      %p228 = scmp.eq.s32.totalorder %s26, 1
      %p229 = por %p227, %p228
      %p230 = scmp.ne.s32.totalorder %s219, %s220
      %p231 = scmp.eq.s32.totalorder %s26, 0
      %p232 = por %p230, %p231
      %p233 = scmp.ne.s32.totalorder %s219, %s220
      %p234 = scmp.eq.s32.totalorder %s27, 1
      %p235 = por %p233, %p234
      %p237 = scmp.ne.s32.totalorder %s220, %s236
      %p238 = scmp.eq.s32.totalorder %s27, 0
      %p239 = por %p237, %p238
      %s240 = ssub.s32 %s28, %s40
      %s241 = ssub.s32 %s29, %s36
      %s242 = sor.u32 %s240, %s241
      %p243 = scmp.eq.s32.totalorder %s242, 0
      %s245 = sadd.s32 %s244, 1
      %s246 = scalar_select %p243, %s244, %s245
      %p249 = pneg %p243
      %p250 = scmp.eq.s32.totalorder %s21, 1
      %p251 = por %p249, %p250
      %p252 = scmp.ne.s32.totalorder %s244, %s247
      %p253 = scmp.eq.s32.totalorder %s21, 0
      %p254 = por %p252, %p253
      %p255 = scmp.ne.s32.totalorder %s244, %s247
      %p256 = scmp.eq.s32.totalorder %s26, 1
      %p257 = por %p255, %p256
      %p258 = scmp.ne.s32.totalorder %s247, %s248
      %p259 = scmp.eq.s32.totalorder %s26, 0
      %p260 = por %p258, %p259
      %p261 = scmp.ne.s32.totalorder %s247, %s248
      %p262 = scmp.eq.s32.totalorder %s27, 1
      %p263 = por %p261, %p262
      %p265 = scmp.ne.s32.totalorder %s248, %s264
      %p266 = scmp.eq.s32.totalorder %s27, 0
      %p267 = por %p265, %p266
      %p268 = scmp.le.s32.totalorder 1, %s21
      %p269 = scmp.lt.s32.totalorder %s21, 3
      %p270 = pnand %p268, %p269
      %p271 = pneg %p270
      // Predicated region
      $region9: #{multi_head_attention.1} parent=5 // pred_check
        _
      $region10: #{multi_head_attention.1} parent=5 // pred_check_branch
        %273 = sbr.rel (%p270) target = $region12
      $region11: #{multi_head_attention.1} parent=5 // pred_region
        %s274 = ssub.s32 %s21, 1
        // Predicated region
        $region13: #{multi_head_attention.1} parent=11 // pred_check
          %p275 = pneg %p162
        $region14: #{multi_head_attention.1} parent=11 // pred_check_branch
          %277 = sbr.rel (%p275) target = $region16
        $region15: #{multi_head_attention.1} parent=11 // pred_region
          _
        $region16: #{multi_head_attention.1} parent=11 // pred_fallthru
          _
        // Predicated region
        $region17: #{multi_head_attention.1} parent=11 // pred_check
          %p278 = pneg %p183
        $region18: #{multi_head_attention.1} parent=11 // pred_check_branch
          %280 = sbr.rel (%p278) target = $region20
        $region19: #{multi_head_attention.1} parent=11 // pred_region
          _
        $region20: #{multi_head_attention.1} parent=11 // pred_fallthru
          _
        // Predicated region
        $region21: #{multi_head_attention.1} parent=11 // pred_check
          %p281 = pneg %p204
        $region22: #{multi_head_attention.1} parent=11 // pred_check_branch
          %283 = sbr.rel (%p281) target = $region24
        $region23: #{multi_head_attention.1} parent=11 // pred_region
          _
        $region24: #{multi_head_attention.1} parent=11 // pred_fallthru
          _
      $region12: #{multi_head_attention.1} parent=5 // pred_fallthru
        _
      %p284 = scmp.lt.s32.totalorder %s21, 2
      // Predicated region
      $region25: #{multi_head_attention.1} parent=5 // pred_check
        %p285 = pneg %p284
      $region26: #{multi_head_attention.1} parent=5 // pred_check_branch
        %287 = sbr.rel (%p285) target = $region28
      $region27: #{multi_head_attention.1} parent=5 // pred_region
        // Predicated region
        $region29: #{multi_head_attention.1} parent=27 // pred_check
          %p288 = pneg %p55
        $region30: #{multi_head_attention.1} parent=27 // pred_check_branch
          %290 = sbr.rel (%p288) target = $region32
        $region31: #{multi_head_attention.1} parent=27 // pred_region
          %p291 = scmp.lt.s32.totalorder %s28, 1
          %s292 = scalar_select %p291, %s28, 1
          %p293 = scmp.lt.s32.totalorder %s29, 0
          %s294 = scalar_select %p293, %s29, 0
          %s295 = sadd.s32 %s294, %s292
          %s296 = smul.addr %s295, 8
          %s297 = scalar_lea.vmem %s0, %s296
        $region32: #{multi_head_attention.1} parent=27 // pred_fallthru
          _
        // Predicated region
        $region33: #{multi_head_attention.1} parent=27 // pred_check
          %p298 = pneg %p83
        $region34: #{multi_head_attention.1} parent=27 // pred_check_branch
          %300 = sbr.rel (%p298) target = $region36
        $region35: #{multi_head_attention.1} parent=27 // pred_region
          %p301 = scmp.lt.s32.totalorder %s28, 1
          %s302 = scalar_select %p301, %s28, 1
          %p303 = scmp.lt.s32.totalorder %s29, 0
          %s304 = scalar_select %p303, %s29, 0
          %s305 = smul.addr %s302, 4
          %s306 = sadd.s32 %s304, %s305
          %s307 = smul.addr %s306, 8
          %s308 = scalar_lea.vmem %s1, %s307
        $region36: #{multi_head_attention.1} parent=27 // pred_fallthru
          _
        // Predicated region
        $region37: #{multi_head_attention.1} parent=27 // pred_check
          %p309 = pneg %p109
        $region38: #{multi_head_attention.1} parent=27 // pred_check_branch
          %311 = sbr.rel (%p309) target = $region40
        $region39: #{multi_head_attention.1} parent=27 // pred_region
          %p312 = scmp.lt.s32.totalorder %s28, 1
          %s313 = scalar_select %p312, %s28, 1
          %s314 = smul.addr %s313, 4
          %s315 = smul.addr %s314, 8
          %s316 = scalar_lea.vmem %s2, %s315
        $region40: #{multi_head_attention.1} parent=27 // pred_fallthru
          _
        // Predicated region
        $region41: #{multi_head_attention.1} parent=27 // pred_check
          %p317 = pneg %p135
        $region42: #{multi_head_attention.1} parent=27 // pred_check_branch
          %319 = sbr.rel (%p317) target = $region44
        $region43: #{multi_head_attention.1} parent=27 // pred_region
          %p320 = scmp.lt.s32.totalorder %s28, 1
          %s321 = scalar_select %p320, %s28, 1
          %s322 = smul.addr %s321, 4
          %s323 = smul.addr %s322, 8
          %s324 = scalar_lea.vmem %s3, %s323
        $region44: #{multi_head_attention.1} parent=27 // pred_fallthru
          _
      $region28: #{multi_head_attention.1} parent=5 // pred_fallthru
        _
      %p325 = scmp.le.s32.totalorder 1, %s21
      %p326 = scmp.lt.s32.totalorder %s21, 3
      %p327 = pnand %p325, %p326
      %p328 = pneg %p327
      // Predicated region
      $region45: #{multi_head_attention.1} parent=5 // pred_check
        _
      $region46: #{multi_head_attention.1} parent=5 // pred_check_branch
        %330 = sbr.rel (%p327) target = $region48
      $region47: #{multi_head_attention.1} parent=5 // pred_region
        %s331 = ssub.s32 %s21, 1
        %p332 = scmp.lt.s32.totalorder %s30, 1
        %s333 = scalar_select %p332, %s30, 1
        %p334 = scmp.lt.s32.totalorder %s31, 0
        %s335 = scalar_select %p334, %s31, 0
        %s336 = sadd.s32 %s335, %s333
        %s337 = smul.addr %s336, 8
        %s338 = scalar_lea.vmem %s0, %s337
        %p339 = pneg %p61
        %p340 = pneg %p58
        %p341 = scmp.lt.s32.totalorder %s30, 1
        %s342 = scalar_select %p341, %s30, 1
        %p343 = scmp.lt.s32.totalorder %s31, 0
        %s344 = scalar_select %p343, %s31, 0
        %s345 = smul.addr %s342, 4
        %s346 = sadd.s32 %s344, %s345
        %s347 = smul.addr %s346, 8
        %s348 = scalar_lea.vmem %s1, %s347
        %p349 = pneg %p89
        %p350 = pneg %p86
        %p351 = scmp.lt.s32.totalorder %s30, 1
        %s352 = scalar_select %p351, %s30, 1
        %s353 = smul.addr %s352, 4
        %s354 = smul.addr %s353, 8
        %s355 = scalar_lea.vmem %s2, %s354
        %p356 = pneg %p115
        %p357 = pneg %p112
        %p358 = scmp.lt.s32.totalorder %s30, 1
        %s359 = scalar_select %p358, %s30, 1
        %s360 = smul.addr %s359, 4
        %s361 = smul.addr %s360, 8
        %s362 = scalar_lea.vmem %s3, %s361
        %p363 = pneg %p141
        %p364 = pneg %p138
        %p365 = pneg %p162
        %p366 = pneg %p159
        %p367 = pneg %p183
        %p368 = pneg %p180
        %p369 = pneg %p204
        %p370 = pneg %p201
        %p371 = pneg %p232
        %p372 = pneg %p229
        %s373 = sand.u32 %s219, 1
        %s374 = scalar_lea.sflag [#allocation3], %s373
        %s375 = sand.u32 %s219, 1
        %s376 = smul.addr %s375, 8
        %s377 = scalar_lea.vmem [#allocation2], %s376
        %p378 = pneg %p260
        %p379 = pneg %p257
        %s380 = sand.u32 %s247, 1
        %s381 = scalar_lea.sflag [#allocation5], %s380
        %s382 = sand.u32 %s247, 1
        %s383 = smul.addr %s382, 32
        %s384 = scalar_lea.vmem [#allocation4], %s383
        %p385 = scmp.lt.s32.totalorder %s30, 1
        %s386 = scalar_select %p385, %s30, 1
        %p387 = scmp.lt.s32.totalorder %s31, 0
        %s388 = scalar_select %p387, %s31, 0
        %s389 = sadd.s32 %s388, %s386
        %s390 = smul.addr %s389, 8
        %s391 = scalar_lea.vmem %s0, %s390
        %p392 = scmp.lt.s32.totalorder %s30, 1
        %s393 = scalar_select %p392, %s30, 1
        %p394 = scmp.lt.s32.totalorder %s31, 0
        %s395 = scalar_select %p394, %s31, 0
        %s396 = smul.addr %s393, 4
        %s397 = sadd.s32 %s395, %s396
        %s398 = smul.addr %s397, 8
        %s399 = scalar_lea.vmem %s1, %s398
        %p400 = scmp.lt.s32.totalorder %s30, 1
        %s401 = scalar_select %p400, %s30, 1
        %s402 = smul.addr %s401, 4
        %s403 = smul.addr %s402, 8
        %s404 = scalar_lea.vmem %s2, %s403
        %p405 = scmp.lt.s32.totalorder %s30, 1
        %s406 = scalar_select %p405, %s30, 1
        %s407 = smul.addr %s406, 4
        %s408 = smul.addr %s407, 8
        %s409 = scalar_lea.vmem %s3, %s408
        %v410 = vld [vmem:[%s399] sm:$0xff]
        %v411 = vld [vmem:[%s399 + $0x8] sm:$0xff]
        %v412 = vld [vmem:[%s399 + $0x10] sm:$0xff]
        %v413 = vld [vmem:[%s399 + $0x18] sm:$0xff]
        %v414 = vld [vmem:[%s404] sm:$0xff]
        %v415 = vld [vmem:[%s404 + $0x8] sm:$0xff]
        %v416 = vld [vmem:[%s404 + $0x10] sm:$0xff]
        %v417 = vld [vmem:[%s404 + $0x18] sm:$0xff]
        %vm418 = vcmask 64512
        %v420 = vsel %vm418, %v410, 0
        %v423 = vsel %vm418, %v414, 0
        %425 = vmatprep.subr.mxu0 0.0
        %426 = vmatpush1.xpose.msra.mxu0 %v423
        %427 = vmatprep.subr.mxu0 0.0
        %428 = vmatpush1.xpose.msra.mxu0 0.0
        %429 = vmatprep.subr.mxu0 0.0
        %430 = vmatpush1.xpose.msra.mxu0 0.0
        %431 = vmatprep.subr.mxu0 0.0
        %432 = vmatpush1.xpose.msra.mxu0 0.0
        %433 = vmatprep.subr.mxu0 0.0
        %434 = vmatpush1.xpose.msra.mxu0 0.0
        %435 = vmatprep.subr.mxu0 0.0
        %436 = vmatpush1.xpose.msra.mxu0 0.0
        %437 = vmatprep.subr.mxu0 0.0
        %438 = vmatpush1.xpose.msra.mxu0 0.0
        %439 = vmatprep.subr.mxu0 0.0
        %440 = vmatpush1.xpose.msra.mxu0 0.0
        %441 = vmatprep.subr.mxu0 0.0
        %442 = vmatpush1.xpose.msra.mxu0 0.0
        %443 = vmatprep.subr.mxu0 0.0
        %444 = vmatpush1.xpose.msra.mxu0 0.0
        %445 = vmatprep.subr.mxu0 0.0
        %446 = vmatpush1.xpose.msra.mxu0 0.0
        %447 = vmatprep.subr.mxu0 0.0
        %448 = vmatpush1.xpose.msra.mxu0 0.0
        %449 = vmatprep.subr.mxu0 0.0
        %450 = vmatpush1.xpose.msra.mxu0 0.0
        %451 = vmatprep.subr.mxu0 0.0
        %452 = vmatpush1.xpose.msra.mxu0 0.0
        %453 = vmatprep.subr.mxu0 0.0
        %454 = vmatpush1.xpose.msra.mxu0 0.0
        %455 = vmatprep.subr.mxu0 0.0
        %456 = vmatpush1.xpose.msra.mxu0 0.0
        %457 = vmatprep.subr.mxu0 0.0
        %458 = vmatpush1.xpose.msra.mxu0 0.0
        %459 = vmatprep.subr.mxu0 0.0
        %460 = vmatpush1.xpose.msra.mxu0 0.0
        %461 = vmatprep.subr.mxu0 0.0
        %462 = vmatpush1.xpose.msra.mxu0 0.0
        %463 = vmatprep.subr.mxu0 0.0
        %464 = vmatpush1.xpose.msra.mxu0 0.0
        %465 = vmatprep.subr.mxu0 0.0
        %466 = vmatpush1.xpose.msra.mxu0 0.0
        %467 = vmatprep.subr.mxu0 0.0
        %468 = vmatpush1.xpose.msra.mxu0 0.0
        %469 = vmatprep.subr.mxu0 0.0
        %470 = vmatpush1.xpose.msra.mxu0 0.0
        %471 = vmatprep.subr.mxu0 0.0
        %472 = vmatpush1.xpose.msra.mxu0 0.0
        %473 = vmatprep.subr.mxu0 0.0
        %474 = vmatpush1.xpose.msra.mxu0 0.0
        %475 = vmatprep.subr.mxu0 0.0
        %476 = vmatpush1.xpose.msra.mxu0 0.0
        %477 = vmatprep.subr.mxu0 0.0
        %478 = vmatpush1.xpose.msra.mxu0 0.0
        %479 = vmatprep.subr.mxu0 0.0
        %480 = vmatpush1.xpose.msra.mxu0 0.0
        %481 = vmatprep.subr.mxu0 0.0
        %482 = vmatpush1.xpose.msra.mxu0 0.0
        %483 = vmatprep.subr.mxu0 0.0
        %484 = vmatpush1.xpose.msra.mxu0 0.0
        %485 = vmatprep.subr.mxu0 0.0
        %486 = vmatpush1.xpose.msra.mxu0 0.0
        %487 = vmatprep.subr.mxu0 0.0
        %488 = vmatpush1.xpose.msra.mxu0 0.0
        %489 = vmatprep.mubr.f32.mxu0 0.0
        %490 = vmatmul.mubr.f32.gmra.mrb[0].mxu0 %v420
        %v491 = vpop.f32.mrb[0].mxu0
        %v492 = vadd.f32 0.0, %v491
        %v493 = vpop.f32.mrb[0].mxu0
        %494 = vdwg.mxu0
        %v496 = vsel %vm418, %v411, 0
        %v499 = vsel %vm418, %v415, 0
        %501 = vmatprep.subr.mxu0 0.0
        %502 = vmatpush1.xpose.msra.mxu0 %v499
        %503 = vmatprep.subr.mxu0 0.0
        %504 = vmatpush1.xpose.msra.mxu0 0.0
        %505 = vmatprep.subr.mxu0 0.0
        %506 = vmatpush1.xpose.msra.mxu0 0.0
        %507 = vmatprep.subr.mxu0 0.0
        %508 = vmatpush1.xpose.msra.mxu0 0.0
        %509 = vmatprep.subr.mxu0 0.0
        %510 = vmatpush1.xpose.msra.mxu0 0.0
        %511 = vmatprep.subr.mxu0 0.0
        %512 = vmatpush1.xpose.msra.mxu0 0.0
        %513 = vmatprep.subr.mxu0 0.0
        %514 = vmatpush1.xpose.msra.mxu0 0.0
        %515 = vmatprep.subr.mxu0 0.0
        %516 = vmatpush1.xpose.msra.mxu0 0.0
        %517 = vmatprep.subr.mxu0 0.0
        %518 = vmatpush1.xpose.msra.mxu0 0.0
        %519 = vmatprep.subr.mxu0 0.0
        %520 = vmatpush1.xpose.msra.mxu0 0.0
        %521 = vmatprep.subr.mxu0 0.0
        %522 = vmatpush1.xpose.msra.mxu0 0.0
        %523 = vmatprep.subr.mxu0 0.0
        %524 = vmatpush1.xpose.msra.mxu0 0.0
        %525 = vmatprep.subr.mxu0 0.0
        %526 = vmatpush1.xpose.msra.mxu0 0.0
        %527 = vmatprep.subr.mxu0 0.0
        %528 = vmatpush1.xpose.msra.mxu0 0.0
        %529 = vmatprep.subr.mxu0 0.0
        %530 = vmatpush1.xpose.msra.mxu0 0.0
        %531 = vmatprep.subr.mxu0 0.0
        %532 = vmatpush1.xpose.msra.mxu0 0.0
        %533 = vmatprep.subr.mxu0 0.0
        %534 = vmatpush1.xpose.msra.mxu0 0.0
        %535 = vmatprep.subr.mxu0 0.0
        %536 = vmatpush1.xpose.msra.mxu0 0.0
        %537 = vmatprep.subr.mxu0 0.0
        %538 = vmatpush1.xpose.msra.mxu0 0.0
        %539 = vmatprep.subr.mxu0 0.0
        %540 = vmatpush1.xpose.msra.mxu0 0.0
        %541 = vmatprep.subr.mxu0 0.0
        %542 = vmatpush1.xpose.msra.mxu0 0.0
        %543 = vmatprep.subr.mxu0 0.0
        %544 = vmatpush1.xpose.msra.mxu0 0.0
        %545 = vmatprep.subr.mxu0 0.0
        %546 = vmatpush1.xpose.msra.mxu0 0.0
        %547 = vmatprep.subr.mxu0 0.0
        %548 = vmatpush1.xpose.msra.mxu0 0.0
        %549 = vmatprep.subr.mxu0 0.0
        %550 = vmatpush1.xpose.msra.mxu0 0.0
        %551 = vmatprep.subr.mxu0 0.0
        %552 = vmatpush1.xpose.msra.mxu0 0.0
        %553 = vmatprep.subr.mxu0 0.0
        %554 = vmatpush1.xpose.msra.mxu0 0.0
        %555 = vmatprep.subr.mxu0 0.0
        %556 = vmatpush1.xpose.msra.mxu0 0.0
        %557 = vmatprep.subr.mxu0 0.0
        %558 = vmatpush1.xpose.msra.mxu0 0.0
        %559 = vmatprep.subr.mxu0 0.0
        %560 = vmatpush1.xpose.msra.mxu0 0.0
        %561 = vmatprep.subr.mxu0 0.0
        %562 = vmatpush1.xpose.msra.mxu0 0.0
        %563 = vmatprep.subr.mxu0 0.0
        %564 = vmatpush1.xpose.msra.mxu0 0.0
        %565 = vmatprep.mubr.f32.mxu0 0.0
        %566 = vmatmul.mubr.f32.gmra.mrb[0].mxu0 %v496
        %v567 = vpop.f32.mrb[0].mxu0
        %v568 = vadd.f32 0.0, %v567
        %v569 = vpop.f32.mrb[0].mxu0
        %570 = vdwg.mxu0
        %v572 = vsel %vm418, %v412, 0
        %v575 = vsel %vm418, %v416, 0
        %577 = vmatprep.subr.mxu0 0.0
        %578 = vmatpush1.xpose.msra.mxu0 %v575
        %579 = vmatprep.subr.mxu0 0.0
        %580 = vmatpush1.xpose.msra.mxu0 0.0
        %581 = vmatprep.subr.mxu0 0.0
        %582 = vmatpush1.xpose.msra.mxu0 0.0
        %583 = vmatprep.subr.mxu0 0.0
        %584 = vmatpush1.xpose.msra.mxu0 0.0
        %585 = vmatprep.subr.mxu0 0.0
        %586 = vmatpush1.xpose.msra.mxu0 0.0
        %587 = vmatprep.subr.mxu0 0.0
        %588 = vmatpush1.xpose.msra.mxu0 0.0
        %589 = vmatprep.subr.mxu0 0.0
        %590 = vmatpush1.xpose.msra.mxu0 0.0
        %591 = vmatprep.subr.mxu0 0.0
        %592 = vmatpush1.xpose.msra.mxu0 0.0
        %593 = vmatprep.subr.mxu0 0.0
        %594 = vmatpush1.xpose.msra.mxu0 0.0
        %595 = vmatprep.subr.mxu0 0.0
        %596 = vmatpush1.xpose.msra.mxu0 0.0
        %597 = vmatprep.subr.mxu0 0.0
        %598 = vmatpush1.xpose.msra.mxu0 0.0
        %599 = vmatprep.subr.mxu0 0.0
        %600 = vmatpush1.xpose.msra.mxu0 0.0
        %601 = vmatprep.subr.mxu0 0.0
        %602 = vmatpush1.xpose.msra.mxu0 0.0
        %603 = vmatprep.subr.mxu0 0.0
        %604 = vmatpush1.xpose.msra.mxu0 0.0
        %605 = vmatprep.subr.mxu0 0.0
        %606 = vmatpush1.xpose.msra.mxu0 0.0
        %607 = vmatprep.subr.mxu0 0.0
        %608 = vmatpush1.xpose.msra.mxu0 0.0
        %609 = vmatprep.subr.mxu0 0.0
        %610 = vmatpush1.xpose.msra.mxu0 0.0
        %611 = vmatprep.subr.mxu0 0.0
        %612 = vmatpush1.xpose.msra.mxu0 0.0
        %613 = vmatprep.subr.mxu0 0.0
        %614 = vmatpush1.xpose.msra.mxu0 0.0
        %615 = vmatprep.subr.mxu0 0.0
        %616 = vmatpush1.xpose.msra.mxu0 0.0
        %617 = vmatprep.subr.mxu0 0.0
        %618 = vmatpush1.xpose.msra.mxu0 0.0
        %619 = vmatprep.subr.mxu0 0.0
        %620 = vmatpush1.xpose.msra.mxu0 0.0
        %621 = vmatprep.subr.mxu0 0.0
        %622 = vmatpush1.xpose.msra.mxu0 0.0
        %623 = vmatprep.subr.mxu0 0.0
        %624 = vmatpush1.xpose.msra.mxu0 0.0
        %625 = vmatprep.subr.mxu0 0.0
        %626 = vmatpush1.xpose.msra.mxu0 0.0
        %627 = vmatprep.subr.mxu0 0.0
        %628 = vmatpush1.xpose.msra.mxu0 0.0
        %629 = vmatprep.subr.mxu0 0.0
        %630 = vmatpush1.xpose.msra.mxu0 0.0
        %631 = vmatprep.subr.mxu0 0.0
        %632 = vmatpush1.xpose.msra.mxu0 0.0
        %633 = vmatprep.subr.mxu0 0.0
        %634 = vmatpush1.xpose.msra.mxu0 0.0
        %635 = vmatprep.subr.mxu0 0.0
        %636 = vmatpush1.xpose.msra.mxu0 0.0
        %637 = vmatprep.subr.mxu0 0.0
        %638 = vmatpush1.xpose.msra.mxu0 0.0
        %639 = vmatprep.subr.mxu0 0.0
        %640 = vmatpush1.xpose.msra.mxu0 0.0
        %641 = vmatprep.mubr.f32.mxu0 0.0
        %642 = vmatmul.mubr.f32.gmra.mrb[0].mxu0 %v572
        %v643 = vpop.f32.mrb[0].mxu0
        %v644 = vadd.f32 0.0, %v643
        %v645 = vpop.f32.mrb[0].mxu0
        %646 = vdwg.mxu0
        %v648 = vsel %vm418, %v413, 0
        %v651 = vsel %vm418, %v417, 0
        %653 = vmatprep.subr.mxu0 0.0
        %654 = vmatpush1.xpose.msra.mxu0 %v651
        %655 = vmatprep.subr.mxu0 0.0
        %656 = vmatpush1.xpose.msra.mxu0 0.0
        %657 = vmatprep.subr.mxu0 0.0
        %658 = vmatpush1.xpose.msra.mxu0 0.0
        %659 = vmatprep.subr.mxu0 0.0
        %660 = vmatpush1.xpose.msra.mxu0 0.0
        %661 = vmatprep.subr.mxu0 0.0
        %662 = vmatpush1.xpose.msra.mxu0 0.0
        %663 = vmatprep.subr.mxu0 0.0
        %664 = vmatpush1.xpose.msra.mxu0 0.0
        %665 = vmatprep.subr.mxu0 0.0
        %666 = vmatpush1.xpose.msra.mxu0 0.0
        %667 = vmatprep.subr.mxu0 0.0
        %668 = vmatpush1.xpose.msra.mxu0 0.0
        %669 = vmatprep.subr.mxu0 0.0
        %670 = vmatpush1.xpose.msra.mxu0 0.0
        %671 = vmatprep.subr.mxu0 0.0
        %672 = vmatpush1.xpose.msra.mxu0 0.0
        %673 = vmatprep.subr.mxu0 0.0
        %674 = vmatpush1.xpose.msra.mxu0 0.0
        %675 = vmatprep.subr.mxu0 0.0
        %676 = vmatpush1.xpose.msra.mxu0 0.0
        %677 = vmatprep.subr.mxu0 0.0
        %678 = vmatpush1.xpose.msra.mxu0 0.0
        %679 = vmatprep.subr.mxu0 0.0
        %680 = vmatpush1.xpose.msra.mxu0 0.0
        %681 = vmatprep.subr.mxu0 0.0
        %682 = vmatpush1.xpose.msra.mxu0 0.0
        %683 = vmatprep.subr.mxu0 0.0
        %684 = vmatpush1.xpose.msra.mxu0 0.0
        %685 = vmatprep.subr.mxu0 0.0
        %686 = vmatpush1.xpose.msra.mxu0 0.0
        %687 = vmatprep.subr.mxu0 0.0
        %688 = vmatpush1.xpose.msra.mxu0 0.0
        %689 = vmatprep.subr.mxu0 0.0
        %690 = vmatpush1.xpose.msra.mxu0 0.0
        %691 = vmatprep.subr.mxu0 0.0
        %692 = vmatpush1.xpose.msra.mxu0 0.0
        %693 = vmatprep.subr.mxu0 0.0
        %694 = vmatpush1.xpose.msra.mxu0 0.0
        %695 = vmatprep.subr.mxu0 0.0
        %696 = vmatpush1.xpose.msra.mxu0 0.0
        %697 = vmatprep.subr.mxu0 0.0
        %698 = vmatpush1.xpose.msra.mxu0 0.0
        %699 = vmatprep.subr.mxu0 0.0
        %700 = vmatpush1.xpose.msra.mxu0 0.0
        %701 = vmatprep.subr.mxu0 0.0
        %702 = vmatpush1.xpose.msra.mxu0 0.0
        %703 = vmatprep.subr.mxu0 0.0
        %704 = vmatpush1.xpose.msra.mxu0 0.0
        %705 = vmatprep.subr.mxu0 0.0
        %706 = vmatpush1.xpose.msra.mxu0 0.0
        %707 = vmatprep.subr.mxu0 0.0
        %708 = vmatpush1.xpose.msra.mxu0 0.0
        %709 = vmatprep.subr.mxu0 0.0
        %710 = vmatpush1.xpose.msra.mxu0 0.0
        %711 = vmatprep.subr.mxu0 0.0
        %712 = vmatpush1.xpose.msra.mxu0 0.0
        %713 = vmatprep.subr.mxu0 0.0
        %714 = vmatpush1.xpose.msra.mxu0 0.0
        %715 = vmatprep.subr.mxu0 0.0
        %716 = vmatpush1.xpose.msra.mxu0 0.0
        %717 = vmatprep.mubr.f32.mxu0 0.0
        %718 = vmatmul.mubr.f32.gmra.mrb[0].mxu0 %v648
        %v719 = vpop.f32.mrb[0].mxu0
        %v720 = vadd.f32 0.0, %v719
        %v721 = vpop.f32.mrb[0].mxu0
        %722 = vdwg.mxu0
        %v723 = vsel %vm418, %v492, -inf
        %724 = vmax.xlane.f32.xlu0 %v723
        %v725 = vpop.xlane.xlu0 %724
        %v726 = vsel %vm418, %v568, -inf
        %727 = vmax.xlane.f32.xlu0 %v726
        %v728 = vpop.xlane.xlu0 %727
        %v729 = vsel %vm418, %v644, -inf
        %730 = vmax.xlane.f32.xlu0 %v729
        %v731 = vpop.xlane.xlu0 %730
        %v732 = vsel %vm418, %v720, -inf
        %733 = vmax.xlane.f32.xlu0 %v732
        %v734 = vpop.xlane.xlu0 %733
        %v735 = vsub.f32 %v492, %v725
        %v736 = vsub.f32 %v568, %v728
        %v737 = vsub.f32 %v644, %v731
        %v738 = vsub.f32 %v720, %v734
        %v739 = vmul.f32 %v735, 1.442695
        %v740 = vpow.pop %v739
        %v741 = vmul.f32 %v736, 1.442695
        %v742 = vpow.pop %v741
        %v743 = vmul.f32 %v737, 1.442695
        %v744 = vpow.pop %v743
        %v745 = vmul.f32 %v738, 1.442695
        %v746 = vpow.pop %v745
        %v747 = vsel %vm418, %v740, 0.0
        %748 = vadd.xlane.f32.xlu0 %v747
        %v749 = vpop.xlane.xlu0 %748
        %v750 = vsel %vm418, %v742, 0.0
        %751 = vadd.xlane.f32.xlu0 %v750
        %v752 = vpop.xlane.xlu0 %751
        %v753 = vsel %vm418, %v744, 0.0
        %754 = vadd.xlane.f32.xlu0 %v753
        %v755 = vpop.xlane.xlu0 %754
        %v756 = vsel %vm418, %v746, 0.0
        %757 = vadd.xlane.f32.xlu0 %v756
        %v758 = vpop.xlane.xlu0 %757
        %v759 = vrcp.pop %v749
        %v760 = vrcp.pop %v752
        %v761 = vrcp.pop %v755
        %v762 = vrcp.pop %v758
        %v763 = vmul.f32 %v749, %v759
        %v764 = vmul.f32 %v752, %v760
        %v765 = vmul.f32 %v755, %v761
        %v766 = vmul.f32 %v758, %v762
        %v767 = vsub.f32 2.0, %v763
        %v768 = vsub.f32 2.0, %v764
        %v769 = vsub.f32 2.0, %v765
        %v770 = vsub.f32 2.0, %v766
        %v771 = vmul.f32 %v759, %v767
        %v772 = vmul.f32 %v760, %v768
        %v773 = vmul.f32 %v761, %v769
        %v774 = vmul.f32 %v762, %v770
        %v775 = vmul.f32 %v740, %v771
        %v776 = vmul.f32 %v742, %v772
        %v777 = vmul.f32 %v744, %v773
        %v778 = vmul.f32 %v746, %v774
        %779 = vst.msk [vmem:[%s384] sm:$0xff] %vm418, %v775
        %780 = vst.msk [vmem:[%s384 + $0x8] sm:$0xff] %vm418, %v776
        %781 = vst.msk [vmem:[%s384 + $0x10] sm:$0xff] %vm418, %v777
        %782 = vst.msk [vmem:[%s384 + $0x18] sm:$0xff] %vm418, %v778
        %v783 = vld [vmem:[%s409] sm:$0xff]
        %v784 = vld [vmem:[%s409 + $0x8] sm:$0xff]
        %v785 = vld [vmem:[%s409 + $0x10] sm:$0xff]
        %v786 = vld [vmem:[%s409 + $0x18] sm:$0xff]
        %v788 = vsel %vm418, %v775, 0
        %790 = vmatprep.subr.mxu0 0.0
        %791 = vmatpush1.msra.mxu0 %v783
        %792 = vmatprep.subr.mxu0 0.0
        %793 = vmatpush1.msra.mxu0 0.0
        %794 = vmatprep.subr.mxu0 0.0
        %795 = vmatpush1.msra.mxu0 0.0
        %796 = vmatprep.subr.mxu0 0.0
        %797 = vmatpush1.msra.mxu0 0.0
        %798 = vmatprep.subr.mxu0 0.0
        %799 = vmatpush1.msra.mxu0 0.0
        %800 = vmatprep.subr.mxu0 0.0
        %801 = vmatpush1.msra.mxu0 0.0
        %802 = vmatprep.subr.mxu0 0.0
        %803 = vmatpush1.msra.mxu0 0.0
        %804 = vmatprep.subr.mxu0 0.0
        %805 = vmatpush1.msra.mxu0 0.0
        %806 = vmatprep.subr.mxu0 0.0
        %807 = vmatpush1.msra.mxu0 0.0
        %808 = vmatprep.subr.mxu0 0.0
        %809 = vmatpush1.msra.mxu0 0.0
        %810 = vmatprep.subr.mxu0 0.0
        %811 = vmatpush1.msra.mxu0 0.0
        %812 = vmatprep.subr.mxu0 0.0
        %813 = vmatpush1.msra.mxu0 0.0
        %814 = vmatprep.subr.mxu0 0.0
        %815 = vmatpush1.msra.mxu0 0.0
        %816 = vmatprep.subr.mxu0 0.0
        %817 = vmatpush1.msra.mxu0 0.0
        %818 = vmatprep.subr.mxu0 0.0
        %819 = vmatpush1.msra.mxu0 0.0
        %820 = vmatprep.subr.mxu0 0.0
        %821 = vmatpush1.msra.mxu0 0.0
        %822 = vmatprep.subr.mxu0 0.0
        %823 = vmatpush1.msra.mxu0 0.0
        %824 = vmatprep.subr.mxu0 0.0
        %825 = vmatpush1.msra.mxu0 0.0
        %826 = vmatprep.subr.mxu0 0.0
        %827 = vmatpush1.msra.mxu0 0.0
        %828 = vmatprep.subr.mxu0 0.0
        %829 = vmatpush1.msra.mxu0 0.0
        %830 = vmatprep.subr.mxu0 0.0
        %831 = vmatpush1.msra.mxu0 0.0
        %832 = vmatprep.subr.mxu0 0.0
        %833 = vmatpush1.msra.mxu0 0.0
        %834 = vmatprep.subr.mxu0 0.0
        %835 = vmatpush1.msra.mxu0 0.0
        %836 = vmatprep.subr.mxu0 0.0
        %837 = vmatpush1.msra.mxu0 0.0
        %838 = vmatprep.subr.mxu0 0.0
        %839 = vmatpush1.msra.mxu0 0.0
        %840 = vmatprep.subr.mxu0 0.0
        %841 = vmatpush1.msra.mxu0 0.0
        %842 = vmatprep.subr.mxu0 0.0
        %843 = vmatpush1.msra.mxu0 0.0
        %844 = vmatprep.subr.mxu0 0.0
        %845 = vmatpush1.msra.mxu0 0.0
        %846 = vmatprep.subr.mxu0 0.0
        %847 = vmatpush1.msra.mxu0 0.0
        %848 = vmatprep.subr.mxu0 0.0
        %849 = vmatpush1.msra.mxu0 0.0
        %850 = vmatprep.subr.mxu0 0.0
        %851 = vmatpush1.msra.mxu0 0.0
        %852 = vmatprep.subr.mxu0 0.0
        %853 = vmatpush1.msra.mxu0 0.0
        %854 = vmatprep.mubr.f32.mxu0 0.0
        %855 = vmatmul.mubr.f32.gmra.mrb[0].mxu0 %v788
        %v856 = vpop.f32.mrb[0].mxu0
        %v857 = vadd.f32 0.0, %v856
        %v858 = vpop.f32.mrb[0].mxu0
        %859 = vdwg.mxu0
        %v861 = vsel %vm418, %v776, 0
        %863 = vmatprep.subr.mxu0 0.0
        %864 = vmatpush1.msra.mxu0 %v784
        %865 = vmatprep.subr.mxu0 0.0
        %866 = vmatpush1.msra.mxu0 0.0
        %867 = vmatprep.subr.mxu0 0.0
        %868 = vmatpush1.msra.mxu0 0.0
        %869 = vmatprep.subr.mxu0 0.0
        %870 = vmatpush1.msra.mxu0 0.0
        %871 = vmatprep.subr.mxu0 0.0
        %872 = vmatpush1.msra.mxu0 0.0
        %873 = vmatprep.subr.mxu0 0.0
        %874 = vmatpush1.msra.mxu0 0.0
        %875 = vmatprep.subr.mxu0 0.0
        %876 = vmatpush1.msra.mxu0 0.0
        %877 = vmatprep.subr.mxu0 0.0
        %878 = vmatpush1.msra.mxu0 0.0
        %879 = vmatprep.subr.mxu0 0.0
        %880 = vmatpush1.msra.mxu0 0.0
        %881 = vmatprep.subr.mxu0 0.0
        %882 = vmatpush1.msra.mxu0 0.0
        %883 = vmatprep.subr.mxu0 0.0
        %884 = vmatpush1.msra.mxu0 0.0
        %885 = vmatprep.subr.mxu0 0.0
        %886 = vmatpush1.msra.mxu0 0.0
        %887 = vmatprep.subr.mxu0 0.0
        %888 = vmatpush1.msra.mxu0 0.0
        %889 = vmatprep.subr.mxu0 0.0
        %890 = vmatpush1.msra.mxu0 0.0
        %891 = vmatprep.subr.mxu0 0.0
        %892 = vmatpush1.msra.mxu0 0.0
        %893 = vmatprep.subr.mxu0 0.0
        %894 = vmatpush1.msra.mxu0 0.0
        %895 = vmatprep.subr.mxu0 0.0
        %896 = vmatpush1.msra.mxu0 0.0
        %897 = vmatprep.subr.mxu0 0.0
        %898 = vmatpush1.msra.mxu0 0.0
        %899 = vmatprep.subr.mxu0 0.0
        %900 = vmatpush1.msra.mxu0 0.0
        %901 = vmatprep.subr.mxu0 0.0
        %902 = vmatpush1.msra.mxu0 0.0
        %903 = vmatprep.subr.mxu0 0.0
        %904 = vmatpush1.msra.mxu0 0.0
        %905 = vmatprep.subr.mxu0 0.0
        %906 = vmatpush1.msra.mxu0 0.0
        %907 = vmatprep.subr.mxu0 0.0
        %908 = vmatpush1.msra.mxu0 0.0
        %909 = vmatprep.subr.mxu0 0.0
        %910 = vmatpush1.msra.mxu0 0.0
        %911 = vmatprep.subr.mxu0 0.0
        %912 = vmatpush1.msra.mxu0 0.0
        %913 = vmatprep.subr.mxu0 0.0
        %914 = vmatpush1.msra.mxu0 0.0
        %915 = vmatprep.subr.mxu0 0.0
        %916 = vmatpush1.msra.mxu0 0.0
        %917 = vmatprep.subr.mxu0 0.0
        %918 = vmatpush1.msra.mxu0 0.0
        %919 = vmatprep.subr.mxu0 0.0
        %920 = vmatpush1.msra.mxu0 0.0
        %921 = vmatprep.subr.mxu0 0.0
        %922 = vmatpush1.msra.mxu0 0.0
        %923 = vmatprep.subr.mxu0 0.0
        %924 = vmatpush1.msra.mxu0 0.0
        %925 = vmatprep.subr.mxu0 0.0
        %926 = vmatpush1.msra.mxu0 0.0
        %927 = vmatprep.mubr.f32.mxu0 0.0
        %928 = vmatmul.mubr.f32.gmra.mrb[0].mxu0 %v861
        %v929 = vpop.f32.mrb[0].mxu0
        %v930 = vadd.f32 0.0, %v929
        %v931 = vpop.f32.mrb[0].mxu0
        %932 = vdwg.mxu0
        %v934 = vsel %vm418, %v777, 0
        %936 = vmatprep.subr.mxu0 0.0
        %937 = vmatpush1.msra.mxu0 %v785
        %938 = vmatprep.subr.mxu0 0.0
        %939 = vmatpush1.msra.mxu0 0.0
        %940 = vmatprep.subr.mxu0 0.0
        %941 = vmatpush1.msra.mxu0 0.0
        %942 = vmatprep.subr.mxu0 0.0
        %943 = vmatpush1.msra.mxu0 0.0
        %944 = vmatprep.subr.mxu0 0.0
        %945 = vmatpush1.msra.mxu0 0.0
        %946 = vmatprep.subr.mxu0 0.0
        %947 = vmatpush1.msra.mxu0 0.0
        %948 = vmatprep.subr.mxu0 0.0
        %949 = vmatpush1.msra.mxu0 0.0
        %950 = vmatprep.subr.mxu0 0.0
        %951 = vmatpush1.msra.mxu0 0.0
        %952 = vmatprep.subr.mxu0 0.0
        %953 = vmatpush1.msra.mxu0 0.0
        %954 = vmatprep.subr.mxu0 0.0
        %955 = vmatpush1.msra.mxu0 0.0
        %956 = vmatprep.subr.mxu0 0.0
        %957 = vmatpush1.msra.mxu0 0.0
        %958 = vmatprep.subr.mxu0 0.0
        %959 = vmatpush1.msra.mxu0 0.0
        %960 = vmatprep.subr.mxu0 0.0
        %961 = vmatpush1.msra.mxu0 0.0
        %962 = vmatprep.subr.mxu0 0.0
        %963 = vmatpush1.msra.mxu0 0.0
        %964 = vmatprep.subr.mxu0 0.0
        %965 = vmatpush1.msra.mxu0 0.0
        %966 = vmatprep.subr.mxu0 0.0
        %967 = vmatpush1.msra.mxu0 0.0
        %968 = vmatprep.subr.mxu0 0.0
        %969 = vmatpush1.msra.mxu0 0.0
        %970 = vmatprep.subr.mxu0 0.0
        %971 = vmatpush1.msra.mxu0 0.0
        %972 = vmatprep.subr.mxu0 0.0
        %973 = vmatpush1.msra.mxu0 0.0
        %974 = vmatprep.subr.mxu0 0.0
        %975 = vmatpush1.msra.mxu0 0.0
        %976 = vmatprep.subr.mxu0 0.0
        %977 = vmatpush1.msra.mxu0 0.0
        %978 = vmatprep.subr.mxu0 0.0
        %979 = vmatpush1.msra.mxu0 0.0
        %980 = vmatprep.subr.mxu0 0.0
        %981 = vmatpush1.msra.mxu0 0.0
        %982 = vmatprep.subr.mxu0 0.0
        %983 = vmatpush1.msra.mxu0 0.0
        %984 = vmatprep.subr.mxu0 0.0
        %985 = vmatpush1.msra.mxu0 0.0
        %986 = vmatprep.subr.mxu0 0.0
        %987 = vmatpush1.msra.mxu0 0.0
        %988 = vmatprep.subr.mxu0 0.0
        %989 = vmatpush1.msra.mxu0 0.0
        %990 = vmatprep.subr.mxu0 0.0
        %991 = vmatpush1.msra.mxu0 0.0
        %992 = vmatprep.subr.mxu0 0.0
        %993 = vmatpush1.msra.mxu0 0.0
        %994 = vmatprep.subr.mxu0 0.0
        %995 = vmatpush1.msra.mxu0 0.0
        %996 = vmatprep.subr.mxu0 0.0
        %997 = vmatpush1.msra.mxu0 0.0
        %998 = vmatprep.subr.mxu0 0.0
        %999 = vmatpush1.msra.mxu0 0.0
        %1000 = vmatprep.mubr.f32.mxu0 0.0
        %1001 = vmatmul.mubr.f32.gmra.mrb[0].mxu0 %v934
        %v1002 = vpop.f32.mrb[0].mxu0
        %v1003 = vadd.f32 0.0, %v1002
        %v1004 = vpop.f32.mrb[0].mxu0
        %1005 = vdwg.mxu0
        %v1007 = vsel %vm418, %v778, 0
        %1009 = vmatprep.subr.mxu0 0.0
        %1010 = vmatpush1.msra.mxu0 %v786
        %1011 = vmatprep.subr.mxu0 0.0
        %1012 = vmatpush1.msra.mxu0 0.0
        %1013 = vmatprep.subr.mxu0 0.0
        %1014 = vmatpush1.msra.mxu0 0.0
        %1015 = vmatprep.subr.mxu0 0.0
        %1016 = vmatpush1.msra.mxu0 0.0
        %1017 = vmatprep.subr.mxu0 0.0
        %1018 = vmatpush1.msra.mxu0 0.0
        %1019 = vmatprep.subr.mxu0 0.0
        %1020 = vmatpush1.msra.mxu0 0.0
        %1021 = vmatprep.subr.mxu0 0.0
        %1022 = vmatpush1.msra.mxu0 0.0
        %1023 = vmatprep.subr.mxu0 0.0
        %1024 = vmatpush1.msra.mxu0 0.0
        %1025 = vmatprep.subr.mxu0 0.0
        %1026 = vmatpush1.msra.mxu0 0.0
        %1027 = vmatprep.subr.mxu0 0.0
        %1028 = vmatpush1.msra.mxu0 0.0
        %1029 = vmatprep.subr.mxu0 0.0
        %1030 = vmatpush1.msra.mxu0 0.0
        %1031 = vmatprep.subr.mxu0 0.0
        %1032 = vmatpush1.msra.mxu0 0.0
        %1033 = vmatprep.subr.mxu0 0.0
        %1034 = vmatpush1.msra.mxu0 0.0
        %1035 = vmatprep.subr.mxu0 0.0
        %1036 = vmatpush1.msra.mxu0 0.0
        %1037 = vmatprep.subr.mxu0 0.0
        %1038 = vmatpush1.msra.mxu0 0.0
        %1039 = vmatprep.subr.mxu0 0.0
        %1040 = vmatpush1.msra.mxu0 0.0
        %1041 = vmatprep.subr.mxu0 0.0
        %1042 = vmatpush1.msra.mxu0 0.0
        %1043 = vmatprep.subr.mxu0 0.0
        %1044 = vmatpush1.msra.mxu0 0.0
        %1045 = vmatprep.subr.mxu0 0.0
        %1046 = vmatpush1.msra.mxu0 0.0
        %1047 = vmatprep.subr.mxu0 0.0
        %1048 = vmatpush1.msra.mxu0 0.0
        %1049 = vmatprep.subr.mxu0 0.0
        %1050 = vmatpush1.msra.mxu0 0.0
        %1051 = vmatprep.subr.mxu0 0.0
        %1052 = vmatpush1.msra.mxu0 0.0
        %1053 = vmatprep.subr.mxu0 0.0
        %1054 = vmatpush1.msra.mxu0 0.0
        %1055 = vmatprep.subr.mxu0 0.0
        %1056 = vmatpush1.msra.mxu0 0.0
        %1057 = vmatprep.subr.mxu0 0.0
        %1058 = vmatpush1.msra.mxu0 0.0
        %1059 = vmatprep.subr.mxu0 0.0
        %1060 = vmatpush1.msra.mxu0 0.0
        %1061 = vmatprep.subr.mxu0 0.0
        %1062 = vmatpush1.msra.mxu0 0.0
        %1063 = vmatprep.subr.mxu0 0.0
        %1064 = vmatpush1.msra.mxu0 0.0
        %1065 = vmatprep.subr.mxu0 0.0
        %1066 = vmatpush1.msra.mxu0 0.0
        %1067 = vmatprep.subr.mxu0 0.0
        %1068 = vmatpush1.msra.mxu0 0.0
        %1069 = vmatprep.subr.mxu0 0.0
        %1070 = vmatpush1.msra.mxu0 0.0
        %1071 = vmatprep.subr.mxu0 0.0
        %1072 = vmatpush1.msra.mxu0 0.0
        %1073 = vmatprep.mubr.f32.mxu0 0.0
        %1074 = vmatmul.mubr.f32.gmra.mrb[0].mxu0 %v1007
        %v1075 = vpop.f32.mrb[0].mxu0
        %v1076 = vadd.f32 0.0, %v1075
        %v1077 = vpop.f32.mrb[0].mxu0
        %1078 = vdwg.mxu0
        %v1079 = vld [vmem:[%s4] sm:$0xff]
        %v1080 = vld [vmem:[%s4 + $0x8] sm:$0xff]
        %v1081 = vld [vmem:[%s4 + $0x10] sm:$0xff]
        %v1082 = vld [vmem:[%s4 + $0x18] sm:$0xff]
        %v1084 = vsel %vm418, %v857, 0
        %1086 = vmatprep.subr.mxu0 0.0
        %1087 = vmatpush1.msra.mxu0 %v1079
        %1088 = vmatprep.subr.mxu0 0.0
        %1089 = vmatpush1.msra.mxu0 0.0
        %1090 = vmatprep.subr.mxu0 0.0
        %1091 = vmatpush1.msra.mxu0 0.0
        %1092 = vmatprep.subr.mxu0 0.0
        %1093 = vmatpush1.msra.mxu0 0.0
        %1094 = vmatprep.subr.mxu0 0.0
        %1095 = vmatpush1.msra.mxu0 0.0
        %1096 = vmatprep.subr.mxu0 0.0
        %1097 = vmatpush1.msra.mxu0 0.0
        %1098 = vmatprep.subr.mxu0 0.0
        %1099 = vmatpush1.msra.mxu0 0.0
        %1100 = vmatprep.subr.mxu0 0.0
        %1101 = vmatpush1.msra.mxu0 0.0
        %1102 = vmatprep.subr.mxu0 0.0
        %1103 = vmatpush1.msra.mxu0 0.0
        %1104 = vmatprep.subr.mxu0 0.0
        %1105 = vmatpush1.msra.mxu0 0.0
        %1106 = vmatprep.subr.mxu0 0.0
        %1107 = vmatpush1.msra.mxu0 0.0
        %1108 = vmatprep.subr.mxu0 0.0
        %1109 = vmatpush1.msra.mxu0 0.0
        %1110 = vmatprep.subr.mxu0 0.0
        %1111 = vmatpush1.msra.mxu0 0.0
        %1112 = vmatprep.subr.mxu0 0.0
        %1113 = vmatpush1.msra.mxu0 0.0
        %1114 = vmatprep.subr.mxu0 0.0
        %1115 = vmatpush1.msra.mxu0 0.0
        %1116 = vmatprep.subr.mxu0 0.0
        %1117 = vmatpush1.msra.mxu0 0.0
        %1118 = vmatprep.subr.mxu0 0.0
        %1119 = vmatpush1.msra.mxu0 0.0
        %1120 = vmatprep.subr.mxu0 0.0
        %1121 = vmatpush1.msra.mxu0 0.0
        %1122 = vmatprep.subr.mxu0 0.0
        %1123 = vmatpush1.msra.mxu0 0.0
        %1124 = vmatprep.subr.mxu0 0.0
        %1125 = vmatpush1.msra.mxu0 0.0
        %1126 = vmatprep.subr.mxu0 0.0
        %1127 = vmatpush1.msra.mxu0 0.0
        %1128 = vmatprep.subr.mxu0 0.0
        %1129 = vmatpush1.msra.mxu0 0.0
        %1130 = vmatprep.subr.mxu0 0.0
        %1131 = vmatpush1.msra.mxu0 0.0
        %1132 = vmatprep.subr.mxu0 0.0
        %1133 = vmatpush1.msra.mxu0 0.0
        %1134 = vmatprep.subr.mxu0 0.0
        %1135 = vmatpush1.msra.mxu0 0.0
        %1136 = vmatprep.subr.mxu0 0.0
        %1137 = vmatpush1.msra.mxu0 0.0
        %1138 = vmatprep.subr.mxu0 0.0
        %1139 = vmatpush1.msra.mxu0 0.0
        %1140 = vmatprep.subr.mxu0 0.0
        %1141 = vmatpush1.msra.mxu0 0.0
        %1142 = vmatprep.subr.mxu0 0.0
        %1143 = vmatpush1.msra.mxu0 0.0
        %1144 = vmatprep.subr.mxu0 0.0
        %1145 = vmatpush1.msra.mxu0 0.0
        %1146 = vmatprep.subr.mxu0 0.0
        %1147 = vmatpush1.msra.mxu0 0.0
        %1148 = vmatprep.subr.mxu0 0.0
        %1149 = vmatpush1.msra.mxu0 0.0
        %1150 = vmatprep.mubr.f32.mxu0 0.0
        %1151 = vmatmul.mubr.f32.gmra.mrb[0].mxu0 %v1084
        %v1152 = vpop.f32.mrb[0].mxu0
        %v1153 = vadd.f32 0.0, %v1152
        %v1154 = vpop.f32.mrb[0].mxu0
        %1155 = vdwg.mxu0
        %v1157 = vsel %vm418, %v930, 0
        %1159 = vmatprep.subr.mxu0 0.0
        %1160 = vmatpush1.msra.mxu0 %v1080
        %1161 = vmatprep.subr.mxu0 0.0
        %1162 = vmatpush1.msra.mxu0 0.0
        %1163 = vmatprep.subr.mxu0 0.0
        %1164 = vmatpush1.msra.mxu0 0.0
        %1165 = vmatprep.subr.mxu0 0.0
        %1166 = vmatpush1.msra.mxu0 0.0
        %1167 = vmatprep.subr.mxu0 0.0
        %1168 = vmatpush1.msra.mxu0 0.0
        %1169 = vmatprep.subr.mxu0 0.0
        %1170 = vmatpush1.msra.mxu0 0.0
        %1171 = vmatprep.subr.mxu0 0.0
        %1172 = vmatpush1.msra.mxu0 0.0
        %1173 = vmatprep.subr.mxu0 0.0
        %1174 = vmatpush1.msra.mxu0 0.0
        %1175 = vmatprep.subr.mxu0 0.0
        %1176 = vmatpush1.msra.mxu0 0.0
        %1177 = vmatprep.subr.mxu0 0.0
        %1178 = vmatpush1.msra.mxu0 0.0
        %1179 = vmatprep.subr.mxu0 0.0
        %1180 = vmatpush1.msra.mxu0 0.0
        %1181 = vmatprep.subr.mxu0 0.0
        %1182 = vmatpush1.msra.mxu0 0.0
        %1183 = vmatprep.subr.mxu0 0.0
        %1184 = vmatpush1.msra.mxu0 0.0
        %1185 = vmatprep.subr.mxu0 0.0
        %1186 = vmatpush1.msra.mxu0 0.0
        %1187 = vmatprep.subr.mxu0 0.0
        %1188 = vmatpush1.msra.mxu0 0.0
        %1189 = vmatprep.subr.mxu0 0.0
        %1190 = vmatpush1.msra.mxu0 0.0
        %1191 = vmatprep.subr.mxu0 0.0
        %1192 = vmatpush1.msra.mxu0 0.0
        %1193 = vmatprep.subr.mxu0 0.0
        %1194 = vmatpush1.msra.mxu0 0.0
        %1195 = vmatprep.subr.mxu0 0.0
        %1196 = vmatpush1.msra.mxu0 0.0
        %1197 = vmatprep.subr.mxu0 0.0
        %1198 = vmatpush1.msra.mxu0 0.0
        %1199 = vmatprep.subr.mxu0 0.0
        %1200 = vmatpush1.msra.mxu0 0.0
        %1201 = vmatprep.subr.mxu0 0.0
        %1202 = vmatpush1.msra.mxu0 0.0
        %1203 = vmatprep.subr.mxu0 0.0
        %1204 = vmatpush1.msra.mxu0 0.0
        %1205 = vmatprep.subr.mxu0 0.0
        %1206 = vmatpush1.msra.mxu0 0.0
        %1207 = vmatprep.subr.mxu0 0.0
        %1208 = vmatpush1.msra.mxu0 0.0
        %1209 = vmatprep.subr.mxu0 0.0
        %1210 = vmatpush1.msra.mxu0 0.0
        %1211 = vmatprep.subr.mxu0 0.0
        %1212 = vmatpush1.msra.mxu0 0.0
        %1213 = vmatprep.subr.mxu0 0.0
        %1214 = vmatpush1.msra.mxu0 0.0
        %1215 = vmatprep.subr.mxu0 0.0
        %1216 = vmatpush1.msra.mxu0 0.0
        %1217 = vmatprep.subr.mxu0 0.0
        %1218 = vmatpush1.msra.mxu0 0.0
        %1219 = vmatprep.subr.mxu0 0.0
        %1220 = vmatpush1.msra.mxu0 0.0
        %1221 = vmatprep.subr.mxu0 0.0
        %1222 = vmatpush1.msra.mxu0 0.0
        %1223 = vmatprep.mubr.f32.mxu0 0.0
        %1224 = vmatmul.mubr.f32.gmra.mrb[0].mxu0 %v1157
        %v1225 = vpop.f32.mrb[0].mxu0
        %v1226 = vadd.f32 0.0, %v1225
        %v1227 = vpop.f32.mrb[0].mxu0
        %1228 = vdwg.mxu0
        %v1230 = vsel %vm418, %v1003, 0
        %1232 = vmatprep.subr.mxu0 0.0
        %1233 = vmatpush1.msra.mxu0 %v1081
        %1234 = vmatprep.subr.mxu0 0.0
        %1235 = vmatpush1.msra.mxu0 0.0
        %1236 = vmatprep.subr.mxu0 0.0
        %1237 = vmatpush1.msra.mxu0 0.0
        %1238 = vmatprep.subr.mxu0 0.0
        %1239 = vmatpush1.msra.mxu0 0.0
        %1240 = vmatprep.subr.mxu0 0.0
        %1241 = vmatpush1.msra.mxu0 0.0
        %1242 = vmatprep.subr.mxu0 0.0
        %1243 = vmatpush1.msra.mxu0 0.0
        %1244 = vmatprep.subr.mxu0 0.0
        %1245 = vmatpush1.msra.mxu0 0.0
        %1246 = vmatprep.subr.mxu0 0.0
        %1247 = vmatpush1.msra.mxu0 0.0
        %1248 = vmatprep.subr.mxu0 0.0
        %1249 = vmatpush1.msra.mxu0 0.0
        %1250 = vmatprep.subr.mxu0 0.0
        %1251 = vmatpush1.msra.mxu0 0.0
        %1252 = vmatprep.subr.mxu0 0.0
        %1253 = vmatpush1.msra.mxu0 0.0
        %1254 = vmatprep.subr.mxu0 0.0
        %1255 = vmatpush1.msra.mxu0 0.0
        %1256 = vmatprep.subr.mxu0 0.0
        %1257 = vmatpush1.msra.mxu0 0.0
        %1258 = vmatprep.subr.mxu0 0.0
        %1259 = vmatpush1.msra.mxu0 0.0
        %1260 = vmatprep.subr.mxu0 0.0
        %1261 = vmatpush1.msra.mxu0 0.0
        %1262 = vmatprep.subr.mxu0 0.0
        %1263 = vmatpush1.msra.mxu0 0.0
        %1264 = vmatprep.subr.mxu0 0.0
        %1265 = vmatpush1.msra.mxu0 0.0
        %1266 = vmatprep.subr.mxu0 0.0
        %1267 = vmatpush1.msra.mxu0 0.0
        %1268 = vmatprep.subr.mxu0 0.0
        %1269 = vmatpush1.msra.mxu0 0.0
        %1270 = vmatprep.subr.mxu0 0.0
        %1271 = vmatpush1.msra.mxu0 0.0
        %1272 = vmatprep.subr.mxu0 0.0
        %1273 = vmatpush1.msra.mxu0 0.0
        %1274 = vmatprep.subr.mxu0 0.0
        %1275 = vmatpush1.msra.mxu0 0.0
        %1276 = vmatprep.subr.mxu0 0.0
        %1277 = vmatpush1.msra.mxu0 0.0
        %1278 = vmatprep.subr.mxu0 0.0
        %1279 = vmatpush1.msra.mxu0 0.0
        %1280 = vmatprep.subr.mxu0 0.0
        %1281 = vmatpush1.msra.mxu0 0.0
        %1282 = vmatprep.subr.mxu0 0.0
        %1283 = vmatpush1.msra.mxu0 0.0
        %1284 = vmatprep.subr.mxu0 0.0
        %1285 = vmatpush1.msra.mxu0 0.0
        %1286 = vmatprep.subr.mxu0 0.0
        %1287 = vmatpush1.msra.mxu0 0.0
        %1288 = vmatprep.subr.mxu0 0.0
        %1289 = vmatpush1.msra.mxu0 0.0
        %1290 = vmatprep.subr.mxu0 0.0
        %1291 = vmatpush1.msra.mxu0 0.0
        %1292 = vmatprep.subr.mxu0 0.0
        %1293 = vmatpush1.msra.mxu0 0.0
        %1294 = vmatprep.subr.mxu0 0.0
        %1295 = vmatpush1.msra.mxu0 0.0
        %1296 = vmatprep.mubr.f32.mxu0 0.0
        %1297 = vmatmul.mubr.f32.gmra.mrb[0].mxu0 %v1230
        %v1298 = vpop.f32.mrb[0].mxu0
        %v1299 = vadd.f32 0.0, %v1298
        %v1300 = vpop.f32.mrb[0].mxu0
        %1301 = vdwg.mxu0
        %v1303 = vsel %vm418, %v1076, 0
        %1305 = vmatprep.subr.mxu0 0.0
        %1306 = vmatpush1.msra.mxu0 %v1082
        %1307 = vmatprep.subr.mxu0 0.0
        %1308 = vmatpush1.msra.mxu0 0.0
        %1309 = vmatprep.subr.mxu0 0.0
        %1310 = vmatpush1.msra.mxu0 0.0
        %1311 = vmatprep.subr.mxu0 0.0
        %1312 = vmatpush1.msra.mxu0 0.0
        %1313 = vmatprep.subr.mxu0 0.0
        %1314 = vmatpush1.msra.mxu0 0.0
        %1315 = vmatprep.subr.mxu0 0.0
        %1316 = vmatpush1.msra.mxu0 0.0
        %1317 = vmatprep.subr.mxu0 0.0
        %1318 = vmatpush1.msra.mxu0 0.0
        %1319 = vmatprep.subr.mxu0 0.0
        %1320 = vmatpush1.msra.mxu0 0.0
        %1321 = vmatprep.subr.mxu0 0.0
        %1322 = vmatpush1.msra.mxu0 0.0
        %1323 = vmatprep.subr.mxu0 0.0
        %1324 = vmatpush1.msra.mxu0 0.0
        %1325 = vmatprep.subr.mxu0 0.0
        %1326 = vmatpush1.msra.mxu0 0.0
        %1327 = vmatprep.subr.mxu0 0.0
        %1328 = vmatpush1.msra.mxu0 0.0
        %1329 = vmatprep.subr.mxu0 0.0
        %1330 = vmatpush1.msra.mxu0 0.0
        %1331 = vmatprep.subr.mxu0 0.0
        %1332 = vmatpush1.msra.mxu0 0.0
        %1333 = vmatprep.subr.mxu0 0.0
        %1334 = vmatpush1.msra.mxu0 0.0
        %1335 = vmatprep.subr.mxu0 0.0
        %1336 = vmatpush1.msra.mxu0 0.0
        %1337 = vmatprep.subr.mxu0 0.0
        %1338 = vmatpush1.msra.mxu0 0.0
        %1339 = vmatprep.subr.mxu0 0.0
        %1340 = vmatpush1.msra.mxu0 0.0
        %1341 = vmatprep.subr.mxu0 0.0
        %1342 = vmatpush1.msra.mxu0 0.0
        %1343 = vmatprep.subr.mxu0 0.0
        %1344 = vmatpush1.msra.mxu0 0.0
        %1345 = vmatprep.subr.mxu0 0.0
        %1346 = vmatpush1.msra.mxu0 0.0
        %1347 = vmatprep.subr.mxu0 0.0
        %1348 = vmatpush1.msra.mxu0 0.0
        %1349 = vmatprep.subr.mxu0 0.0
        %1350 = vmatpush1.msra.mxu0 0.0
        %1351 = vmatprep.subr.mxu0 0.0
        %1352 = vmatpush1.msra.mxu0 0.0
        %1353 = vmatprep.subr.mxu0 0.0
        %1354 = vmatpush1.msra.mxu0 0.0
        %1355 = vmatprep.subr.mxu0 0.0
        %1356 = vmatpush1.msra.mxu0 0.0
        %1357 = vmatprep.subr.mxu0 0.0
        %1358 = vmatpush1.msra.mxu0 0.0
        %1359 = vmatprep.subr.mxu0 0.0
        %1360 = vmatpush1.msra.mxu0 0.0
        %1361 = vmatprep.subr.mxu0 0.0
        %1362 = vmatpush1.msra.mxu0 0.0
        %1363 = vmatprep.subr.mxu0 0.0
        %1364 = vmatpush1.msra.mxu0 0.0
        %1365 = vmatprep.subr.mxu0 0.0
        %1366 = vmatpush1.msra.mxu0 0.0
        %1367 = vmatprep.subr.mxu0 0.0
        %1368 = vmatpush1.msra.mxu0 0.0
        %1369 = vmatprep.mubr.f32.mxu0 0.0
        %1370 = vmatmul.mubr.f32.gmra.mrb[0].mxu0 %v1303
        %v1371 = vpop.f32.mrb[0].mxu0
        %v1372 = vadd.f32 0.0, %v1371
        %v1373 = vpop.f32.mrb[0].mxu0
        %1374 = vdwg.mxu0
        %vm1375 = vcmask 261120
        %v1376 = vsel %vm1375, %v1153, 0.0
        %v1377 = vsel %vm1375, %v1226, 0.0
        %v1378 = vadd.f32 %v1376, %v1377
        %v1379 = vsel %vm1375, %v1299, 0.0
        %v1380 = vadd.f32 %v1378, %v1379
        %v1381 = vsel %vm1375, %v1372, 0.0
        %v1382 = vadd.f32 %v1380, %v1381
        %v1383 = vld [vmem:[%s391] sm:$0xff]
        %v1384 = vadd.f32 %v1382, %v1383
        %v1385 = vsel %vm1375, %v1384, 0.0
        %1386 = vadd.xlane.f32.xlu0 %v1385
        %v1387 = vpop.xlane.xlu0 %1386
        %v1388 = vrcp.pop 32.0
        %v1389 = vmul.f32 %v1387, %v1388
        %v1390 = vsub.f32 %v1384, %v1389
        %v1391 = vmul.f32 %v1390, %v1390
        %v1392 = vsel %vm1375, %v1391, 0.0
        %1393 = vadd.xlane.f32.xlu0 %v1392
        %v1394 = vpop.xlane.xlu0 %1393
        %v1395 = vmul.f32 %v1394, %v1388
        %v1396 = vadd.f32 %v1395, 1e-06
        %v1397 = vrsqrt.pop %v1396
        %v1398 = vmul.f32 %v1390, %v1397
        %v1399 = vld [vmem:[%s5] sm:$0x1]
        %v1401 = vlaneseq
        %v1402 = vshrl.u32 %v1401, 7
        %v1403 = vsub.s32 0, %v1402
        %v1404 = vrot.slane %v1399, %v1403
        %v1406 = vmul.f32 %v1398, %v1404
        %v1407 = vld [vmem:[%s6] sm:$0x1]
        %v1409 = vlaneseq
        %v1410 = vshrl.u32 %v1409, 7
        %v1411 = vsub.s32 0, %v1410
        %v1412 = vrot.slane %v1407, %v1411
        %v1414 = vadd.f32 %v1406, %v1412
        %1415 = vst.msk [vmem:[%s377] sm:$0xff] %vm1375, %v1414
        %s1416 = sand.u32 %s219, 1
        %s1417 = scalar_lea.sflag [#allocation3], %s1416
        %s1418 = sand.u32 %s219, 1
        %s1419 = smul.addr %s1418, 8
        %s1420 = scalar_lea.vmem [#allocation2], %s1419
        %s1421 = sand.u32 %s247, 1
        %s1422 = scalar_lea.sflag [#allocation5], %s1421
        %s1423 = sand.u32 %s247, 1
        %s1424 = smul.addr %s1423, 32
        %s1425 = scalar_lea.vmem [#allocation4], %s1424
        // Predicated region
        $region49: #{multi_head_attention.1} parent=47 // pred_check
          %p1426 = pneg %p229
        $region50: #{multi_head_attention.1} parent=47 // pred_check_branch
          %1428 = sbr.rel (%p1426) target = $region52
        $region51: #{multi_head_attention.1} parent=47 // pred_region
          %s1430 = ssub.s32 128, 128
          %1431 = vsyncadd %s1417, %s1430
          %s1432 = sadd.s32 %s31, %s30
          %s1433 = smul.addr %s1432, 128
          %s1434 = scalar_lea.hbm %s7, %s1433
          %s1436 = sshll.u32 %s1420, 4
          %s1437 = int_to_ptr.vmem [resolvable:$true] %s1436
          %1439 = dma.vmem_to_hbm [thread:$0]  %s1437, 128, %s1434, %s1417
        $region52: #{multi_head_attention.1} parent=47 // pred_fallthru
          _
        // Predicated region
        $region53: #{multi_head_attention.1} parent=47 // pred_check
          %p1440 = pneg %p257
        $region54: #{multi_head_attention.1} parent=47 // pred_check_branch
          %1442 = sbr.rel (%p1440) target = $region56
        $region55: #{multi_head_attention.1} parent=47 // pred_region
          %s1444 = ssub.s32 512, 512
          %1445 = vsyncadd %s1422, %s1444
          %s1446 = smul.addr %s30, 4
          %s1447 = sadd.s32 %s31, %s1446
          %s1448 = smul.addr %s1447, 128
          %s1449 = scalar_lea.hbm %s8, %s1448
          %s1450 = sshll.u32 %s1425, 4
          %s1451 = int_to_ptr.vmem [resolvable:$true] %s1450
          %1456 = dma.vmem_to_hbm [thread:$0]  %s1451, 512, %s1449, %s1422, 128, 128, 8
        $region56: #{multi_head_attention.1} parent=47 // pred_fallthru
          _
      $region48: #{multi_head_attention.1} parent=5 // pred_fallthru
        _
      %p1457 = scmp.le.s32.totalorder 2, %s21
      // Predicated region
      $region57: #{multi_head_attention.1} parent=5 // pred_check
        %p1458 = pneg %p1457
      $region58: #{multi_head_attention.1} parent=5 // pred_check_branch
        %1460 = sbr.rel (%p1458) target = $region60
      $region59: #{multi_head_attention.1} parent=5 // pred_region
        %s1461 = ssub.s32 %s21, 2
        // Predicated region
        $region61: #{multi_head_attention.1} parent=59 // pred_check
          %p1462 = pneg %p235
        $region62: #{multi_head_attention.1} parent=59 // pred_check_branch
          %1464 = sbr.rel (%p1462) target = $region64
        $region63: #{multi_head_attention.1} parent=59 // pred_region
          %s1465 = sand.u32 %s220, 1
          %s1466 = scalar_lea.sflag [#allocation3], %s1465
          %s1467 = sand.u32 %s220, 1
          %s1468 = smul.addr %s1467, 8
          %s1469 = scalar_lea.vmem [#allocation2], %s1468
          %1470 = dma.done %s1466, 128
        $region64: #{multi_head_attention.1} parent=59 // pred_fallthru
          _
        // Predicated region
        $region65: #{multi_head_attention.1} parent=59 // pred_check
          %p1471 = pneg %p263
        $region66: #{multi_head_attention.1} parent=59 // pred_check_branch
          %1473 = sbr.rel (%p1471) target = $region68
        $region67: #{multi_head_attention.1} parent=59 // pred_region
          %s1474 = sand.u32 %s248, 1
          %s1475 = scalar_lea.sflag [#allocation5], %s1474
          %s1476 = sand.u32 %s248, 1
          %s1477 = smul.addr %s1476, 32
          %s1478 = scalar_lea.vmem [#allocation4], %s1477
          %1479 = dma.done %s1475, 512
        $region68: #{multi_head_attention.1} parent=59 // pred_fallthru
          _
      $region60: #{multi_head_attention.1} parent=5 // pred_fallthru
        _
    $region6: #{multi_head_attention.1} parent=1 // loop_footer
      %s25 = sadd.s32 1, %s21
    $region7: #{multi_head_attention.1} parent=1 // loop_footer_branch
      %20 = sbr.rel target = $region3
    $region8: #{multi_head_attention.1} parent=1 // loop_exit
      _
    %1480 = vsyncpa [#allocation3], 1
    %s1481 = scalar_lea.sflag [#allocation3], 1
    %1482 = vsyncpa %s1481, 1
    %1483 = vsyncpa [#allocation5], 1
    %s1484 = scalar_lea.sflag [#allocation5], 1
    %1485 = vsyncpa %s1484, 1

</llo_original>
